<compile_context>
chip_gen: v7x
topology: tpu7x:2x2x1
jax: 0.10.0
libtpu: 0.0.40
codegen_flags: <defaults>
</compile_context>

<pallas_src>
import functools

import jax
import jax.numpy as jnp
from jax.experimental import pallas as pl
from jax.experimental.pallas import tpu as pltpu


def _round_up(x, m):
    return (x + m - 1) // m * m


# ----------------------------------------------------------------------------
# Fused per-layer kernel: input projection + recurrence.
# Grid = (time_blocks,); h/c state and the one-time-dequantized bf16 weights
# live in VMEM scratch across grid steps.
# NOTE: the pl.when(t == 0) init is only correct because the time axis is the
# ONLY (and therefore innermost) grid axis — do not reorder/extend the grid
# without revisiting it.
# ----------------------------------------------------------------------------
def _fused_lstm_layer_kernel(s_ref,       # SMEM f32[2]          : [s_ih, s_hh]
                             x_ref,       # VMEM (Tb*Bp, K) bf16 : input block
                             w_ih_ref,    # VMEM (K, 4Hp) int8
                             w_hh_ref,    # VMEM (Hp, 4Hp) int8
                             b_ref,       # VMEM (1, 4Hp) f32    : b_ih + b_hh
                             h0_ref,      # VMEM (Bp, Hp) f32
                             c0_ref,      # VMEM (Bp, Hp) f32
                             out_ref,     # VMEM (Tb, Bp, Hp) bf16
                             hn_ref,      # VMEM (Bp, Hp) f32 (resident)
                             cn_ref,      # VMEM (Bp, Hp) f32 (resident)
                             h_scr,       # VMEM (Bp, Hp) f32 scratch
                             c_scr,       # VMEM (Bp, Hp) f32 scratch
                             w_ih_scr,    # VMEM (K, 4Hp) bf16 scratch
                             w_hh_scr,    # VMEM (Hp, 4Hp) bf16 scratch
                             gin_scr,     # VMEM (Tb*Bp, 4Hp) f32 scratch
                             *, seq_len, block_t):
    t = pl.program_id(0)
    Bp, Hp = h_scr.shape

    @pl.when(t == 0)
    def _():
        h_scr[...] = h0_ref[...]
        c_scr[...] = c0_ref[...]
        # Dequantize once per layer: int8 -> bf16 is exact; the per-tensor
        # scales are applied to the matmul outputs, not to the weights.
        w_ih_scr[...] = w_ih_ref[...].astype(jnp.bfloat16)
        w_hh_scr[...] = w_hh_ref[...].astype(jnp.bfloat16)

    s_ih = s_ref[0]
    s_hh = s_ref[1]

    # Fused, hoisted input projection for the whole time block:
    # (Tb*Bp, K) @ (K, 4Hp), bf16 x bf16 -> f32 accumulation on the MXU.
    gin_scr[...] = (
        jnp.dot(x_ref[...], w_ih_scr[...],
                preferred_element_type=jnp.float32) * s_ih + b_ref[...])

    w_hh = w_hh_scr[...]
    h = h_scr[...]
    c = c_scr[...]
    for s in range(block_t):                       # static unroll
        acc = jnp.dot(h.astype(jnp.bfloat16), w_hh,
                      preferred_element_type=jnp.float32)
        gates = acc * s_hh + gin_scr[s * Bp:(s + 1) * Bp, :]   # (Bp, 4Hp) f32
        i_g = jax.nn.sigmoid(gates[:, 0 * Hp:1 * Hp])
        f_g = jax.nn.sigmoid(gates[:, 1 * Hp:2 * Hp])
        g_g = jnp.tanh(gates[:, 2 * Hp:3 * Hp])
        o_g = jax.nn.sigmoid(gates[:, 3 * Hp:4 * Hp])
        c = f_g * c + i_g * g_g
        h = o_g * jnp.tanh(c)
        out_ref[s] = h.astype(out_ref.dtype)

        # Snapshot the final state exactly at global step T-1 (padded tail
        # steps of the last block are computed but never observed) — cheaper
        # than masking h/c with vector selects on every step.
        @pl.when(t * block_t + s == seq_len - 1)
        def _(h=h, c=c):
            hn_ref[...] = h
            cn_ref[...] = c

    h_scr[...] = h
    c_scr[...] = c


def _vmem_limit_bytes(Tb, Bp, K, Hp):
    """Explicit scoped-VMEM budget from the real buffer sum (+ headroom)."""
    N4 = 4 * Hp
    need = (
        2 * Tb * Bp * K * 2          # x blocks (bf16, double-buffered)
        + 2 * K * N4                 # W_ih int8 pipeline buffers
        + 2 * Hp * N4                # W_hh int8 pipeline buffers
        + 2 * N4 * 4                 # bias
        + 4 * Bp * Hp * 4            # h0 / c0
        + 2 * Tb * Bp * Hp * 2       # out blocks (bf16)
        + 4 * Bp * Hp * 4            # h_n / c_n
        + 2 * Bp * Hp * 4            # h / c state scratch
        + K * N4 * 2 + Hp * N4 * 2   # dequantized bf16 weight scratch
        + Tb * Bp * N4 * 4           # gates_in scratch
    )
    return int(min(max(2 * need + (4 << 20), 32 << 20), 64 << 20))


def _lstm_layer_forward(x_tbk, w_ih_q, w_hh_q, bias, scales, h0, c0,
                        *, seq_len, block_t):
    """One LSTM layer.

    x_tbk: (T, Bp, K) bf16; returns (out (T, Bp, Hp) bf16, h_n, c_n f32)."""
    T, Bp, K = x_tbk.shape
    N4 = w_hh_q.shape[1]
    Hp = N4 // 4

    Tb = min(seq_len, block_t)
    nt = pl.cdiv(seq_len, Tb)
    Tp = nt * Tb
    if Tp != T:
        x_tbk = jnp.pad(x_tbk, ((0, Tp - T), (0, 0), (0, 0)))
    x2d = x_tbk.reshape(Tp * Bp, K)

    kernel = functools.partial(_fused_lstm_layer_kernel,
                               seq_len=seq_len, block_t=Tb)

    out, h_n, c_n = pl.pallas_call(
        kernel,
        out_shape=(
            jax.ShapeDtypeStruct((Tp, Bp, Hp), jnp.bfloat16),
            jax.ShapeDtypeStruct((Bp, Hp), jnp.float32),
            jax.ShapeDtypeStruct((Bp, Hp), jnp.float32),
        ),
        grid_spec=pltpu.PrefetchScalarGridSpec(
            num_scalar_prefetch=0,
            grid=(nt,),
            in_specs=[
                pl.BlockSpec(memory_space=pltpu.MemorySpace.SMEM),  # scales
                pl.BlockSpec((Tb * Bp, K), lambda t: (t, 0)),       # x block
                pl.BlockSpec((K, N4), lambda t: (0, 0)),            # W_ih int8
                pl.BlockSpec((Hp, N4), lambda t: (0, 0)),           # W_hh int8
                pl.BlockSpec((1, N4), lambda t: (0, 0)),            # bias
                pl.BlockSpec((Bp, Hp), lambda t: (0, 0)),           # h0
                pl.BlockSpec((Bp, Hp), lambda t: (0, 0)),           # c0
            ],
            out_specs=(
                pl.BlockSpec((Tb, Bp, Hp), lambda t: (t, 0, 0)),    # outputs
                pl.BlockSpec((Bp, Hp), lambda t: (0, 0)),           # h_n
                pl.BlockSpec((Bp, Hp), lambda t: (0, 0)),           # c_n
            ),
            scratch_shapes=[
                pltpu.VMEM((Bp, Hp), jnp.float32),        # h state
                pltpu.VMEM((Bp, Hp), jnp.float32),        # c state
                pltpu.VMEM((K, N4), jnp.bfloat16),        # dequantized W_ih
                pltpu.VMEM((Hp, N4), jnp.bfloat16),       # dequantized W_hh
                pltpu.VMEM((Tb * Bp, N4), jnp.float32),   # gates_in block
            ],
        ),
        compiler_params=pltpu.CompilerParams(
            dimension_semantics=("arbitrary",),
            vmem_limit_bytes=_vmem_limit_bytes(Tb, Bp, K, Hp)),
    )(scales, x2d, w_ih_q, w_hh_q, bias, h0, c0)

    return out[:seq_len], h_n, c_n


# ----------------------------------------------------------------------------
# Quantization / padding helpers + module-level wrapper.
# ----------------------------------------------------------------------------
def _quantize_per_tensor_symmetric(w):
    scale = jnp.maximum(jnp.max(jnp.abs(w)), 1e-8) / 127.0
    q = jnp.clip(jnp.round(w / scale), -128, 127).astype(jnp.int8)
    return q, scale.astype(jnp.float32)


def _pad_gate_weight(w_q, H, Hp, Kp):
    """(K, 4H) -> (Kp, 4Hp): zero-pad rows and each gate's column block."""
    K = w_q.shape[0]
    out = jnp.zeros((Kp, 4 * Hp), dtype=w_q.dtype)
    for g in range(4):
        out = out.at[:K, g * Hp:g * Hp + H].set(w_q[:, g * H:(g + 1) * H])
    return out


def _pad_gate_bias(b, H, Hp):
    out = jnp.zeros((4 * Hp,), dtype=b.dtype)
    for g in range(4):
        out = out.at[g * Hp:g * Hp + H].set(b[g * H:(g + 1) * H])
    return out.reshape(1, 4 * Hp)


class QuantizedDynamicLSTM:
    """Mirrors torch.nn.quantized.dynamic.LSTM forward (unidirectional,
    bias=True, batch_first=False); weights are per-tensor-symmetric qint8."""

    def __init__(self, input_size, hidden_size, num_layers=1, key=None):
        self.input_size = input_size
        self.hidden_size = hidden_size
        self.num_layers = num_layers
        self.Hp = _round_up(hidden_size, 128)       # lane-aligned hidden size
        self.Kp0 = _round_up(input_size, 8)         # sublane-aligned layer-0 K
        if key is None:
            key = jax.random.PRNGKey(0)
        k = 1.0 / jnp.sqrt(hidden_size)
        H, Hp = hidden_size, self.Hp
        self.layers = []
        for layer in range(num_layers):
            layer_in = input_size if layer == 0 else hidden_size
            in_pad = self.Kp0 if layer == 0 else Hp
            key, k1, k2, k3, k4 = jax.random.split(key, 5)
            # PyTorch stores weight_ih as (4H, in); we keep the transposed
            # (in, 4H) layout for the MXU-friendly x @ W form.
            w_ih = jax.random.uniform(k1, (layer_in, 4 * H),
                                      minval=-k, maxval=k, dtype=jnp.float32)
            w_hh = jax.random.uniform(k2, (H, 4 * H),
                                      minval=-k, maxval=k, dtype=jnp.float32)
            b_ih = jax.random.uniform(k3, (4 * H,),
                                      minval=-k, maxval=k, dtype=jnp.float32)
            b_hh = jax.random.uniform(k4, (4 * H,),
                                      minval=-k, maxval=k, dtype=jnp.float32)
            w_ih_q, s_ih = _quantize_per_tensor_symmetric(w_ih)
            w_hh_q, s_hh = _quantize_per_tensor_symmetric(w_hh)
            bias = b_ih + b_hh
            self.layers.append(dict(
                w_ih_q=_pad_gate_weight(w_ih_q, H, Hp, in_pad),
                w_hh_q=_pad_gate_weight(w_hh_q, H, Hp, Hp),
                scales=jnp.stack([s_ih, s_hh]),
                bias=_pad_gate_bias(bias, H, Hp),
                # unpadded copies for the pure-JAX reference
                w_ih_q_raw=w_ih_q, w_hh_q_raw=w_hh_q, bias_raw=bias,
            ))

    def __call__(self, x, hx=None):
        # x: (T, B, input_size)   (batch_first=False)
        T, B, _ = x.shape
        H, Hp, L = self.hidden_size, self.Hp, self.num_layers
        Bp = _round_up(max(B, 8), 8)
        block_t = 8 if Hp >= 1024 else 16        # Tb sweep: VMEM vs overhead

        # Layer-0 input: bf16 (halves HBM traffic), batch and feature padded.
        x0 = jnp.zeros((T, Bp, self.Kp0), jnp.bfloat16)
        x0 = x0.at[:, :B, :self.input_size].set(x.astype(jnp.bfloat16))

        if hx is None:
            h0 = jnp.zeros((L, Bp, Hp), jnp.float32)
            c0 = jnp.zeros((L, Bp, Hp), jnp.float32)
        else:
            h0u, c0u = hx
            h0 = jnp.zeros((L, Bp, Hp), jnp.float32).at[:, :B, :H].set(h0u)
            c0 = jnp.zeros((L, Bp, Hp), jnp.float32).at[:, :B, :H].set(c0u)

        layer_input = x0
        h_ns, c_ns = [], []
        for l, p in enumerate(self.layers):
            out, h_n, c_n = _lstm_layer_forward(
                layer_input, p["w_ih_q"], p["w_hh_q"], p["bias"], p["scales"],
                h0[l], c0[l], seq_len=T, block_t=block_t)
            layer_input = out                    # (T, Bp, Hp) bf16
            h_ns.append(h_n)
            c_ns.append(c_n)

        output = layer_input[:, :B, :H].astype(jnp.float32)
        h_n = jnp.stack(h_ns)[:, :B, :H]
        c_n = jnp.stack(c_ns)[:, :B, :H]
        return output, (h_n, c_n)


# ----------------------------------------------------------------------------
# Pure-JAX reference mirroring the kernel math (bf16 MXU operands and bf16
# inter-layer activations, f32 accumulation / cell state, per-tensor scales
# applied to matmul outputs) on the UNPADDED weights.
# ----------------------------------------------------------------------------
def _lstm_ref(model, x, hx=None):
    T, B, _ = x.shape
    H = model.hidden_size
    if hx is None:
        h0 = jnp.zeros((model.num_layers, B, H), jnp.float32)
        c0 = jnp.zeros((model.num_layers, B, H), jnp.float32)
    else:
        h0, c0 = hx
    layer_input = x.astype(jnp.bfloat16)
    h_ns, c_ns = [], []
    for l, p in enumerate(model.layers):
        w_ih = p["w_ih_q_raw"].astype(jnp.bfloat16)
        w_hh = p["w_hh_q_raw"].astype(jnp.bfloat16)
        s_ih = p["scales"][0]
        s_hh = p["scales"][1]
        b = p["bias_raw"]
        h, c = h0[l], c0[l]
        outs = []
        for t in range(T):
            gin = jnp.dot(layer_input[t], w_ih,
                          preferred_element_type=jnp.float32) * s_ih + b
            acc = jnp.dot(h.astype(jnp.bfloat16), w_hh,
                          preferred_element_type=jnp.float32) * s_hh
            gates = acc + gin
            i_g = jax.nn.sigmoid(gates[:, 0 * H:1 * H])
            f_g = jax.nn.sigmoid(gates[:, 1 * H:2 * H])
            g_g = jnp.tanh(gates[:, 2 * H:3 * H])
            o_g = jax.nn.sigmoid(gates[:, 3 * H:4 * H])
            c = f_g * c + i_g * g_g
            h = o_g * jnp.tanh(c)
            outs.append(h)
        layer_input = jnp.stack(outs).astype(jnp.bfloat16)  # bf16 layer output
        h_ns.append(h)
        c_ns.append(c)
    return layer_input.astype(jnp.float32), (jnp.stack(h_ns), jnp.stack(c_ns))


if __name__ == "__main__":
    T, B, I, H, L = 8, 4, 16, 32, 2

    key = jax.random.PRNGKey(0)
    kx, kp, kh, kc = jax.random.split(key, 4)
    x = jax.random.normal(kx, (T, B, I), dtype=jnp.float32)

    model = QuantizedDynamicLSTM(input_size=I, hidden_size=H,
                                 num_layers=L, key=kp)

    # Case 1: default (zero) initial state.
    out, (h_n, c_n) = model(x)
    jax.block_until_ready((out, h_n, c_n))
    ref_out, (ref_h, ref_c) = _lstm_ref(model, x)

    assert out.shape == (T, B, H)
    assert h_n.shape == (L, B, H) and c_n.shape == (L, B, H)
    assert jnp.allclose(out, ref_out, rtol=2e-3, atol=2.5e-3)
    assert jnp.allclose(h_n, ref_h, rtol=2e-3, atol=2.5e-3)
    assert jnp.allclose(c_n, ref_c, rtol=2e-3, atol=2.5e-3)

    # Case 2: user-provided initial state.
    h0 = 0.1 * jax.random.normal(kh, (L, B, H), dtype=jnp.float32)
    c0 = 0.1 * jax.random.normal(kc, (L, B, H), dtype=jnp.float32)
    out2, (h2, c2) = model(x, (h0, c0))
    jax.block_until_ready((out2, h2, c2))
    r_out2, (r_h2, r_c2) = _lstm_ref(model, x, (h0, c0))
    assert jnp.allclose(out2, r_out2, rtol=2e-3, atol=2.5e-3)
    assert jnp.allclose(h2, r_h2, rtol=2e-3, atol=2.5e-3)
    assert jnp.allclose(c2, r_c2, rtol=2e-3, atol=2.5e-3)

    print("KERNEL_OK")
</pallas_src>

<mosaic_0001>
module attributes {stable_mosaic.version = 11 : i64} {
  func.func @_fused_lstm_layer_kernel(%arg0: i32, %arg1: memref<2xf32, #tpu.memory_space<smem>>, %arg2: memref<64x16xbf16, #tpu.memory_space<vmem>>, %arg3: memref<16x512xi8, #tpu.memory_space<vmem>>, %arg4: memref<128x512xi8, #tpu.memory_space<vmem>>, %arg5: memref<1x512xf32, #tpu.memory_space<vmem>>, %arg6: memref<8x128xf32, #tpu.memory_space<vmem>>, %arg7: memref<8x128xf32, #tpu.memory_space<vmem>>, %arg8: memref<8x8x128xbf16, #tpu.memory_space<vmem>>, %arg9: memref<8x128xf32, #tpu.memory_space<vmem>>, %arg10: memref<8x128xf32, #tpu.memory_space<vmem>>, %arg11: memref<8x128xf32, #tpu.memory_space<vmem>>, %arg12: memref<8x128xf32, #tpu.memory_space<vmem>>, %arg13: memref<16x512xbf16, #tpu.memory_space<vmem>>, %arg14: memref<128x512xbf16, #tpu.memory_space<vmem>>, %arg15: memref<64x512xf32, #tpu.memory_space<vmem>>) attributes {dimension_semantics = [#tpu.dimension_semantics<arbitrary>], iteration_bounds = array<i64: 1>, scalar_prefetch = 0 : i64, scratch_operands = 5 : i64, tpu.core_type = #tpu.core_type<tc>, window_params = [{transform_indices = @transform_0, window_bounds = array<i64: 2>}, {transform_indices = @transform_1, window_bounds = array<i64: 64, 16>}, {pipeline_mode = #tpu.pipeline_mode<synchronous>, transform_indices = @transform_2, window_bounds = array<i64: 16, 512>}, {pipeline_mode = #tpu.pipeline_mode<synchronous>, transform_indices = @transform_3, window_bounds = array<i64: 128, 512>}, {pipeline_mode = #tpu.pipeline_mode<synchronous>, transform_indices = @transform_4, window_bounds = array<i64: 1, 512>}, {pipeline_mode = #tpu.pipeline_mode<synchronous>, transform_indices = @transform_5, window_bounds = array<i64: 8, 128>}, {pipeline_mode = #tpu.pipeline_mode<synchronous>, transform_indices = @transform_6, window_bounds = array<i64: 8, 128>}, {transform_indices = @transform_7, window_bounds = array<i64: 8, 8, 128>}, {pipeline_mode = #tpu.pipeline_mode<synchronous>, transform_indices = @transform_8, window_bounds = array<i64: 8, 128>}, {pipeline_mode = #tpu.pipeline_mode<synchronous>, transform_indices = @transform_9, window_bounds = array<i64: 8, 128>}]} {
    %c0_i32 = arith.constant 0 : i32
    %0 = arith.cmpi eq, %arg0, %c0_i32 : i32
    %1 = arith.extui %0 : i1 to i32
    %c0_i32_0 = arith.constant 0 : i32
    %2 = arith.cmpi ne, %1, %c0_i32_0 : i32
    scf.if %2 {
      %c0_102 = arith.constant 0 : index
      %c0_103 = arith.constant 0 : index
      %339 = vector.load %arg6[%c0_102, %c0_103] : memref<8x128xf32, #tpu.memory_space<vmem>>, vector<8x128xf32>
      %c0_104 = arith.constant 0 : index
      %c0_105 = arith.constant 0 : index
      %340 = vector.load %arg11[%c0_104, %c0_105] : memref<8x128xf32, #tpu.memory_space<vmem>>, vector<8x128xf32>
      tpu.vector_store %arg11[%c0_104, %c0_105], %339 {strides = array<i32>} : memref<8x128xf32, #tpu.memory_space<vmem>>, vector<8x128xf32>,
      %c0_106 = arith.constant 0 : index
      %c0_107 = arith.constant 0 : index
      %341 = vector.load %arg7[%c0_106, %c0_107] : memref<8x128xf32, #tpu.memory_space<vmem>>, vector<8x128xf32>
      %c0_108 = arith.constant 0 : index
      %c0_109 = arith.constant 0 : index
      %342 = vector.load %arg12[%c0_108, %c0_109] : memref<8x128xf32, #tpu.memory_space<vmem>>, vector<8x128xf32>
      tpu.vector_store %arg12[%c0_108, %c0_109], %341 {strides = array<i32>} : memref<8x128xf32, #tpu.memory_space<vmem>>, vector<8x128xf32>,
      %c0_110 = arith.constant 0 : index
      %c0_111 = arith.constant 0 : index
      %343 = vector.load %arg3[%c0_110, %c0_111] : memref<16x512xi8, #tpu.memory_space<vmem>>, vector<16x512xi8>
      %344 = arith.sitofp %343 : vector<16x512xi8> to vector<16x512xbf16>
      %c0_112 = arith.constant 0 : index
      %c0_113 = arith.constant 0 : index
      %345 = vector.load %arg13[%c0_112, %c0_113] : memref<16x512xbf16, #tpu.memory_space<vmem>>, vector<16x512xbf16>
      tpu.vector_store %arg13[%c0_112, %c0_113], %344 {strides = array<i32>} : memref<16x512xbf16, #tpu.memory_space<vmem>>, vector<16x512xbf16>,
      %c0_114 = arith.constant 0 : index
      %c0_115 = arith.constant 0 : index
      %346 = vector.load %arg4[%c0_114, %c0_115] : memref<128x512xi8, #tpu.memory_space<vmem>>, vector<128x512xi8>
      %347 = arith.sitofp %346 : vector<128x512xi8> to vector<128x512xbf16>
      %c0_116 = arith.constant 0 : index
      %c0_117 = arith.constant 0 : index
      %348 = vector.load %arg14[%c0_116, %c0_117] : memref<128x512xbf16, #tpu.memory_space<vmem>>, vector<128x512xbf16>
      tpu.vector_store %arg14[%c0_116, %c0_117], %347 {strides = array<i32>} : memref<128x512xbf16, #tpu.memory_space<vmem>>, vector<128x512xbf16>,
    } else {
    }
    %c0 = arith.constant 0 : index
    %3 = memref.load %arg1[%c0] : memref<2xf32, #tpu.memory_space<smem>>
    %c1 = arith.constant 1 : index
    %4 = memref.load %arg1[%c1] : memref<2xf32, #tpu.memory_space<smem>>
    %c0_1 = arith.constant 0 : index
    %c0_2 = arith.constant 0 : index
    %5 = vector.load %arg2[%c0_1, %c0_2] : memref<64x16xbf16, #tpu.memory_space<vmem>>, vector<64x16xbf16>
    %c0_3 = arith.constant 0 : index
    %c0_4 = arith.constant 0 : index
    %6 = vector.load %arg13[%c0_3, %c0_4] : memref<16x512xbf16, #tpu.memory_space<vmem>>, vector<16x512xbf16>
    %cst = arith.constant dense<0.000000e+00> : vector<64x512xf32>
    %7 = tpu.matmul %5, %6, %cst {dimension_numbers = #tpu.dot_dimension_numbers<[1], [0], [0], [1], [0, 0, 1, 1], [], []>} : vector<64x16xbf16>, vector<16x512xbf16>, vector<64x512xf32> -> vector<64x512xf32>
    %8 = vector.broadcast %3 : f32 to vector<64x512xf32>
    %9 = arith.mulf %7, %8 : vector<64x512xf32>
    %c0_5 = arith.constant 0 : index
    %c0_6 = arith.constant 0 : index
    %10 = vector.load %arg5[%c0_5, %c0_6] : memref<1x512xf32, #tpu.memory_space<vmem>>, vector<1x512xf32>
    %11 = vector.broadcast %10 : vector<1x512xf32> to vector<64x512xf32>
    %12 = arith.addf %9, %11 : vector<64x512xf32>
    %c0_7 = arith.constant 0 : index
    %c0_8 = arith.constant 0 : index
    %13 = vector.load %arg15[%c0_7, %c0_8] : memref<64x512xf32, #tpu.memory_space<vmem>>, vector<64x512xf32>
    tpu.vector_store %arg15[%c0_7, %c0_8], %12 {strides = array<i32>} : memref<64x512xf32, #tpu.memory_space<vmem>>, vector<64x512xf32>,
    %c0_9 = arith.constant 0 : index
    %c0_10 = arith.constant 0 : index
    %14 = vector.load %arg14[%c0_9, %c0_10] : memref<128x512xbf16, #tpu.memory_space<vmem>>, vector<128x512xbf16>
    %c0_11 = arith.constant 0 : index
    %c0_12 = arith.constant 0 : index
    %15 = vector.load %arg11[%c0_11, %c0_12] : memref<8x128xf32, #tpu.memory_space<vmem>>, vector<8x128xf32>
    %c0_13 = arith.constant 0 : index
    %c0_14 = arith.constant 0 : index
    %16 = vector.load %arg12[%c0_13, %c0_14] : memref<8x128xf32, #tpu.memory_space<vmem>>, vector<8x128xf32>
    %17 = arith.truncf %15 : vector<8x128xf32> to vector<8x128xbf16>
    %cst_15 = arith.constant dense<0.000000e+00> : vector<8x512xf32>
    %18 = tpu.matmul %17, %14, %cst_15 {dimension_numbers = #tpu.dot_dimension_numbers<[1], [0], [0], [1], [0, 0, 1, 1], [], []>} : vector<8x128xbf16>, vector<128x512xbf16>, vector<8x512xf32> -> vector<8x512xf32>
    %19 = vector.broadcast %4 : f32 to vector<8x512xf32>
    %20 = arith.mulf %18, %19 : vector<8x512xf32>
    %c0_16 = arith.constant 0 : index
    %c0_17 = arith.constant 0 : index
    %21 = vector.load %arg15[%c0_16, %c0_17] : memref<64x512xf32, #tpu.memory_space<vmem>>, vector<8x512xf32>
    %22 = arith.addf %20, %21 : vector<8x512xf32>
    %23 = vector.extract_strided_slice %22 {offsets = [0, 0], sizes = [8, 128], strides = [1, 1]} : vector<8x512xf32> to vector<8x128xf32>
    %24 = arith.negf %23 : vector<8x128xf32>
    %25 = math.exp %24 : vector<8x128xf32>
    %cst_18 = arith.constant 1.000000e+00 : f32
    %26 = vector.broadcast %cst_18 : f32 to vector<8x128xf32>
    %27 = arith.addf %26, %25 : vector<8x128xf32>
    %28 = arith.divf %26, %27 : vector<8x128xf32>
    %29 = vector.extract_strided_slice %22 {offsets = [0, 128], sizes = [8, 128], strides = [1, 1]} : vector<8x512xf32> to vector<8x128xf32>
    %30 = arith.negf %29 : vector<8x128xf32>
    %31 = math.exp %30 : vector<8x128xf32>
    %cst_19 = arith.constant 1.000000e+00 : f32
    %32 = vector.broadcast %cst_19 : f32 to vector<8x128xf32>
    %33 = arith.addf %32, %31 : vector<8x128xf32>
    %34 = arith.divf %32, %33 : vector<8x128xf32>
    %35 = vector.extract_strided_slice %22 {offsets = [0, 256], sizes = [8, 128], strides = [1, 1]} : vector<8x512xf32> to vector<8x128xf32>
    %36 = math.tanh %35 : vector<8x128xf32>
    %37 = vector.extract_strided_slice %22 {offsets = [0, 384], sizes = [8, 128], strides = [1, 1]} : vector<8x512xf32> to vector<8x128xf32>
    %38 = arith.negf %37 : vector<8x128xf32>
    %39 = math.exp %38 : vector<8x128xf32>
    %cst_20 = arith.constant 1.000000e+00 : f32
    %40 = vector.broadcast %cst_20 : f32 to vector<8x128xf32>
    %41 = arith.addf %40, %39 : vector<8x128xf32>
    %42 = arith.divf %40, %41 : vector<8x128xf32>
    %43 = arith.mulf %34, %16 : vector<8x128xf32>
    %44 = arith.mulf %28, %36 : vector<8x128xf32>
    %45 = arith.addf %43, %44 : vector<8x128xf32>
    %46 = math.tanh %45 : vector<8x128xf32>
    %47 = arith.mulf %42, %46 : vector<8x128xf32>
    %48 = arith.truncf %47 : vector<8x128xf32> to vector<8x128xbf16>
    %c0_21 = arith.constant 0 : index
    %c0_22 = arith.constant 0 : index
    %c0_23 = arith.constant 0 : index
    %49 = vector.load %arg8[%c0_21, %c0_22, %c0_23] : memref<8x8x128xbf16, #tpu.memory_space<vmem>>, vector<1x8x128xbf16>
    %50 = vector.shape_cast %49 : vector<1x8x128xbf16> to vector<8x128xbf16>
    %51 = vector.shape_cast %48 : vector<8x128xbf16> to vector<1x8x128xbf16>
    tpu.vector_store %arg8[%c0_21, %c0_22, %c0_23], %51 {strides = array<i32>} : memref<8x8x128xbf16, #tpu.memory_space<vmem>>, vector<1x8x128xbf16>,
    %c8_i32 = arith.constant 8 : i32
    %52 = arith.muli %arg0, %c8_i32 : i32
    %c0_i32_24 = arith.constant 0 : i32
    %53 = arith.addi %52, %c0_i32_24 : i32
    %c7_i32 = arith.constant 7 : i32
    %54 = arith.cmpi eq, %53, %c7_i32 : i32
    %55 = arith.extui %54 : i1 to i32
    %c0_i32_25 = arith.constant 0 : i32
    %56 = arith.cmpi ne, %55, %c0_i32_25 : i32
    scf.if %56 {
      %c0_102 = arith.constant 0 : index
      %c0_103 = arith.constant 0 : index
      %339 = vector.load %arg9[%c0_102, %c0_103] : memref<8x128xf32, #tpu.memory_space<vmem>>, vector<8x128xf32>
      tpu.vector_store %arg9[%c0_102, %c0_103], %47 {strides = array<i32>} : memref<8x128xf32, #tpu.memory_space<vmem>>, vector<8x128xf32>,
      %c0_104 = arith.constant 0 : index
      %c0_105 = arith.constant 0 : index
      %340 = vector.load %arg10[%c0_104, %c0_105] : memref<8x128xf32, #tpu.memory_space<vmem>>, vector<8x128xf32>
      tpu.vector_store %arg10[%c0_104, %c0_105], %45 {strides = array<i32>} : memref<8x128xf32, #tpu.memory_space<vmem>>, vector<8x128xf32>,
    } else {
    }
    %57 = arith.truncf %47 : vector<8x128xf32> to vector<8x128xbf16>
    %cst_26 = arith.constant dense<0.000000e+00> : vector<8x512xf32>
    %58 = tpu.matmul %57, %14, %cst_26 {dimension_numbers = #tpu.dot_dimension_numbers<[1], [0], [0], [1], [0, 0, 1, 1], [], []>} : vector<8x128xbf16>, vector<128x512xbf16>, vector<8x512xf32> -> vector<8x512xf32>
    %59 = vector.broadcast %4 : f32 to vector<8x512xf32>
    %60 = arith.mulf %58, %59 : vector<8x512xf32>
    %c8 = arith.constant 8 : index
    %c0_27 = arith.constant 0 : index
    %61 = vector.load %arg15[%c8, %c0_27] : memref<64x512xf32, #tpu.memory_space<vmem>>, vector<8x512xf32>
    %62 = arith.addf %60, %61 : vector<8x512xf32>
    %63 = vector.extract_strided_slice %62 {offsets = [0, 0], sizes = [8, 128], strides = [1, 1]} : vector<8x512xf32> to vector<8x128xf32>
    %64 = arith.negf %63 : vector<8x128xf32>
    %65 = math.exp %64 : vector<8x128xf32>
    %cst_28 = arith.constant 1.000000e+00 : f32
    %66 = vector.broadcast %cst_28 : f32 to vector<8x128xf32>
    %67 = arith.addf %66, %65 : vector<8x128xf32>
    %68 = arith.divf %66, %67 : vector<8x128xf32>
    %69 = vector.extract_strided_slice %62 {offsets = [0, 128], sizes = [8, 128], strides = [1, 1]} : vector<8x512xf32> to vector<8x128xf32>
    %70 = arith.negf %69 : vector<8x128xf32>
    %71 = math.exp %70 : vector<8x128xf32>
    %cst_29 = arith.constant 1.000000e+00 : f32
    %72 = vector.broadcast %cst_29 : f32 to vector<8x128xf32>
    %73 = arith.addf %72, %71 : vector<8x128xf32>
    %74 = arith.divf %72, %73 : vector<8x128xf32>
    %75 = vector.extract_strided_slice %62 {offsets = [0, 256], sizes = [8, 128], strides = [1, 1]} : vector<8x512xf32> to vector<8x128xf32>
    %76 = math.tanh %75 : vector<8x128xf32>
    %77 = vector.extract_strided_slice %62 {offsets = [0, 384], sizes = [8, 128], strides = [1, 1]} : vector<8x512xf32> to vector<8x128xf32>
    %78 = arith.negf %77 : vector<8x128xf32>
    %79 = math.exp %78 : vector<8x128xf32>
    %cst_30 = arith.constant 1.000000e+00 : f32
    %80 = vector.broadcast %cst_30 : f32 to vector<8x128xf32>
    %81 = arith.addf %80, %79 : vector<8x128xf32>
    %82 = arith.divf %80, %81 : vector<8x128xf32>
    %83 = arith.mulf %74, %45 : vector<8x128xf32>
    %84 = arith.mulf %68, %76 : vector<8x128xf32>
    %85 = arith.addf %83, %84 : vector<8x128xf32>
    %86 = math.tanh %85 : vector<8x128xf32>
    %87 = arith.mulf %82, %86 : vector<8x128xf32>
    %88 = arith.truncf %87 : vector<8x128xf32> to vector<8x128xbf16>
    %c1_31 = arith.constant 1 : index
    %c0_32 = arith.constant 0 : index
    %c0_33 = arith.constant 0 : index
    %89 = vector.load %arg8[%c1_31, %c0_32, %c0_33] : memref<8x8x128xbf16, #tpu.memory_space<vmem>>, vector<1x8x128xbf16>
    %90 = vector.shape_cast %89 : vector<1x8x128xbf16> to vector<8x128xbf16>
    %91 = vector.shape_cast %88 : vector<8x128xbf16> to vector<1x8x128xbf16>
    tpu.vector_store %arg8[%c1_31, %c0_32, %c0_33], %91 {strides = array<i32>} : memref<8x8x128xbf16, #tpu.memory_space<vmem>>, vector<1x8x128xbf16>,
    %c8_i32_34 = arith.constant 8 : i32
    %92 = arith.muli %arg0, %c8_i32_34 : i32
    %c1_i32 = arith.constant 1 : i32
    %93 = arith.addi %92, %c1_i32 : i32
    %c7_i32_35 = arith.constant 7 : i32
    %94 = arith.cmpi eq, %93, %c7_i32_35 : i32
    %95 = arith.extui %94 : i1 to i32
    %c0_i32_36 = arith.constant 0 : i32
    %96 = arith.cmpi ne, %95, %c0_i32_36 : i32
    scf.if %96 {
      %c0_102 = arith.constant 0 : index
      %c0_103 = arith.constant 0 : index
      %339 = vector.load %arg9[%c0_102, %c0_103] : memref<8x128xf32, #tpu.memory_space<vmem>>, vector<8x128xf32>
      tpu.vector_store %arg9[%c0_102, %c0_103], %87 {strides = array<i32>} : memref<8x128xf32, #tpu.memory_space<vmem>>, vector<8x128xf32>,
      %c0_104 = arith.constant 0 : index
      %c0_105 = arith.constant 0 : index
      %340 = vector.load %arg10[%c0_104, %c0_105] : memref<8x128xf32, #tpu.memory_space<vmem>>, vector<8x128xf32>
      tpu.vector_store %arg10[%c0_104, %c0_105], %85 {strides = array<i32>} : memref<8x128xf32, #tpu.memory_space<vmem>>, vector<8x128xf32>,
    } else {
    }
    %97 = arith.truncf %87 : vector<8x128xf32> to vector<8x128xbf16>
    %cst_37 = arith.constant dense<0.000000e+00> : vector<8x512xf32>
    %98 = tpu.matmul %97, %14, %cst_37 {dimension_numbers = #tpu.dot_dimension_numbers<[1], [0], [0], [1], [0, 0, 1, 1], [], []>} : vector<8x128xbf16>, vector<128x512xbf16>, vector<8x512xf32> -> vector<8x512xf32>
    %99 = vector.broadcast %4 : f32 to vector<8x512xf32>
    %100 = arith.mulf %98, %99 : vector<8x512xf32>
    %c16 = arith.constant 16 : index
    %c0_38 = arith.constant 0 : index
    %101 = vector.load %arg15[%c16, %c0_38] : memref<64x512xf32, #tpu.memory_space<vmem>>, vector<8x512xf32>
    %102 = arith.addf %100, %101 : vector<8x512xf32>
    %103 = vector.extract_strided_slice %102 {offsets = [0, 0], sizes = [8, 128], strides = [1, 1]} : vector<8x512xf32> to vector<8x128xf32>
    %104 = arith.negf %103 : vector<8x128xf32>
    %105 = math.exp %104 : vector<8x128xf32>
    %cst_39 = arith.constant 1.000000e+00 : f32
    %106 = vector.broadcast %cst_39 : f32 to vector<8x128xf32>
    %107 = arith.addf %106, %105 : vector<8x128xf32>
    %108 = arith.divf %106, %107 : vector<8x128xf32>
    %109 = vector.extract_strided_slice %102 {offsets = [0, 128], sizes = [8, 128], strides = [1, 1]} : vector<8x512xf32> to vector<8x128xf32>
    %110 = arith.negf %109 : vector<8x128xf32>
    %111 = math.exp %110 : vector<8x128xf32>
    %cst_40 = arith.constant 1.000000e+00 : f32
    %112 = vector.broadcast %cst_40 : f32 to vector<8x128xf32>
    %113 = arith.addf %112, %111 : vector<8x128xf32>
    %114 = arith.divf %112, %113 : vector<8x128xf32>
    %115 = vector.extract_strided_slice %102 {offsets = [0, 256], sizes = [8, 128], strides = [1, 1]} : vector<8x512xf32> to vector<8x128xf32>
    %116 = math.tanh %115 : vector<8x128xf32>
    %117 = vector.extract_strided_slice %102 {offsets = [0, 384], sizes = [8, 128], strides = [1, 1]} : vector<8x512xf32> to vector<8x128xf32>
    %118 = arith.negf %117 : vector<8x128xf32>
    %119 = math.exp %118 : vector<8x128xf32>
    %cst_41 = arith.constant 1.000000e+00 : f32
    %120 = vector.broadcast %cst_41 : f32 to vector<8x128xf32>
    %121 = arith.addf %120, %119 : vector<8x128xf32>
    %122 = arith.divf %120, %121 : vector<8x128xf32>
    %123 = arith.mulf %114, %85 : vector<8x128xf32>
    %124 = arith.mulf %108, %116 : vector<8x128xf32>
    %125 = arith.addf %123, %124 : vector<8x128xf32>
    %126 = math.tanh %125 : vector<8x128xf32>
    %127 = arith.mulf %122, %126 : vector<8x128xf32>
    %128 = arith.truncf %127 : vector<8x128xf32> to vector<8x128xbf16>
    %c2 = arith.constant 2 : index
    %c0_42 = arith.constant 0 : index
    %c0_43 = arith.constant 0 : index
    %129 = vector.load %arg8[%c2, %c0_42, %c0_43] : memref<8x8x128xbf16, #tpu.memory_space<vmem>>, vector<1x8x128xbf16>
    %130 = vector.shape_cast %129 : vector<1x8x128xbf16> to vector<8x128xbf16>
    %131 = vector.shape_cast %128 : vector<8x128xbf16> to vector<1x8x128xbf16>
    tpu.vector_store %arg8[%c2, %c0_42, %c0_43], %131 {strides = array<i32>} : memref<8x8x128xbf16, #tpu.memory_space<vmem>>, vector<1x8x128xbf16>,
    %c8_i32_44 = arith.constant 8 : i32
    %132 = arith.muli %arg0, %c8_i32_44 : i32
    %c2_i32 = arith.constant 2 : i32
    %133 = arith.addi %132, %c2_i32 : i32
    %c7_i32_45 = arith.constant 7 : i32
    %134 = arith.cmpi eq, %133, %c7_i32_45 : i32
    %135 = arith.extui %134 : i1 to i32
    %c0_i32_46 = arith.constant 0 : i32
    %136 = arith.cmpi ne, %135, %c0_i32_46 : i32
    scf.if %136 {
      %c0_102 = arith.constant 0 : index
      %c0_103 = arith.constant 0 : index
      %339 = vector.load %arg9[%c0_102, %c0_103] : memref<8x128xf32, #tpu.memory_space<vmem>>, vector<8x128xf32>
      tpu.vector_store %arg9[%c0_102, %c0_103], %127 {strides = array<i32>} : memref<8x128xf32, #tpu.memory_space<vmem>>, vector<8x128xf32>,
      %c0_104 = arith.constant 0 : index
      %c0_105 = arith.constant 0 : index
      %340 = vector.load %arg10[%c0_104, %c0_105] : memref<8x128xf32, #tpu.memory_space<vmem>>, vector<8x128xf32>
      tpu.vector_store %arg10[%c0_104, %c0_105], %125 {strides = array<i32>} : memref<8x128xf32, #tpu.memory_space<vmem>>, vector<8x128xf32>,
    } else {
    }
    %137 = arith.truncf %127 : vector<8x128xf32> to vector<8x128xbf16>
    %cst_47 = arith.constant dense<0.000000e+00> : vector<8x512xf32>
    %138 = tpu.matmul %137, %14, %cst_47 {dimension_numbers = #tpu.dot_dimension_numbers<[1], [0], [0], [1], [0, 0, 1, 1], [], []>} : vector<8x128xbf16>, vector<128x512xbf16>, vector<8x512xf32> -> vector<8x512xf32>
    %139 = vector.broadcast %4 : f32 to vector<8x512xf32>
    %140 = arith.mulf %138, %139 : vector<8x512xf32>
    %c24 = arith.constant 24 : index
    %c0_48 = arith.constant 0 : index
    %141 = vector.load %arg15[%c24, %c0_48] : memref<64x512xf32, #tpu.memory_space<vmem>>, vector<8x512xf32>
    %142 = arith.addf %140, %141 : vector<8x512xf32>
    %143 = vector.extract_strided_slice %142 {offsets = [0, 0], sizes = [8, 128], strides = [1, 1]} : vector<8x512xf32> to vector<8x128xf32>
    %144 = arith.negf %143 : vector<8x128xf32>
    %145 = math.exp %144 : vector<8x128xf32>
    %cst_49 = arith.constant 1.000000e+00 : f32
    %146 = vector.broadcast %cst_49 : f32 to vector<8x128xf32>
    %147 = arith.addf %146, %145 : vector<8x128xf32>
    %148 = arith.divf %146, %147 : vector<8x128xf32>
    %149 = vector.extract_strided_slice %142 {offsets = [0, 128], sizes = [8, 128], strides = [1, 1]} : vector<8x512xf32> to vector<8x128xf32>
    %150 = arith.negf %149 : vector<8x128xf32>
    %151 = math.exp %150 : vector<8x128xf32>
    %cst_50 = arith.constant 1.000000e+00 : f32
    %152 = vector.broadcast %cst_50 : f32 to vector<8x128xf32>
    %153 = arith.addf %152, %151 : vector<8x128xf32>
    %154 = arith.divf %152, %153 : vector<8x128xf32>
    %155 = vector.extract_strided_slice %142 {offsets = [0, 256], sizes = [8, 128], strides = [1, 1]} : vector<8x512xf32> to vector<8x128xf32>
    %156 = math.tanh %155 : vector<8x128xf32>
    %157 = vector.extract_strided_slice %142 {offsets = [0, 384], sizes = [8, 128], strides = [1, 1]} : vector<8x512xf32> to vector<8x128xf32>
    %158 = arith.negf %157 : vector<8x128xf32>
    %159 = math.exp %158 : vector<8x128xf32>
    %cst_51 = arith.constant 1.000000e+00 : f32
    %160 = vector.broadcast %cst_51 : f32 to vector<8x128xf32>
    %161 = arith.addf %160, %159 : vector<8x128xf32>
    %162 = arith.divf %160, %161 : vector<8x128xf32>
    %163 = arith.mulf %154, %125 : vector<8x128xf32>
    %164 = arith.mulf %148, %156 : vector<8x128xf32>
    %165 = arith.addf %163, %164 : vector<8x128xf32>
    %166 = math.tanh %165 : vector<8x128xf32>
    %167 = arith.mulf %162, %166 : vector<8x128xf32>
    %168 = arith.truncf %167 : vector<8x128xf32> to vector<8x128xbf16>
    %c3 = arith.constant 3 : index
    %c0_52 = arith.constant 0 : index
    %c0_53 = arith.constant 0 : index
    %169 = vector.load %arg8[%c3, %c0_52, %c0_53] : memref<8x8x128xbf16, #tpu.memory_space<vmem>>, vector<1x8x128xbf16>
    %170 = vector.shape_cast %169 : vector<1x8x128xbf16> to vector<8x128xbf16>
    %171 = vector.shape_cast %168 : vector<8x128xbf16> to vector<1x8x128xbf16>
    tpu.vector_store %arg8[%c3, %c0_52, %c0_53], %171 {strides = array<i32>} : memref<8x8x128xbf16, #tpu.memory_space<vmem>>, vector<1x8x128xbf16>,
    %c8_i32_54 = arith.constant 8 : i32
    %172 = arith.muli %arg0, %c8_i32_54 : i32
    %c3_i32 = arith.constant 3 : i32
    %173 = arith.addi %172, %c3_i32 : i32
    %c7_i32_55 = arith.constant 7 : i32
    %174 = arith.cmpi eq, %173, %c7_i32_55 : i32
    %175 = arith.extui %174 : i1 to i32
    %c0_i32_56 = arith.constant 0 : i32
    %176 = arith.cmpi ne, %175, %c0_i32_56 : i32
    scf.if %176 {
      %c0_102 = arith.constant 0 : index
      %c0_103 = arith.constant 0 : index
      %339 = vector.load %arg9[%c0_102, %c0_103] : memref<8x128xf32, #tpu.memory_space<vmem>>, vector<8x128xf32>
      tpu.vector_store %arg9[%c0_102, %c0_103], %167 {strides = array<i32>} : memref<8x128xf32, #tpu.memory_space<vmem>>, vector<8x128xf32>,
      %c0_104 = arith.constant 0 : index
      %c0_105 = arith.constant 0 : index
      %340 = vector.load %arg10[%c0_104, %c0_105] : memref<8x128xf32, #tpu.memory_space<vmem>>, vector<8x128xf32>
      tpu.vector_store %arg10[%c0_104, %c0_105], %165 {strides = array<i32>} : memref<8x128xf32, #tpu.memory_space<vmem>>, vector<8x128xf32>,
    } else {
    }
    %177 = arith.truncf %167 : vector<8x128xf32> to vector<8x128xbf16>
    %cst_57 = arith.constant dense<0.000000e+00> : vector<8x512xf32>
    %178 = tpu.matmul %177, %14, %cst_57 {dimension_numbers = #tpu.dot_dimension_numbers<[1], [0], [0], [1], [0, 0, 1, 1], [], []>} : vector<8x128xbf16>, vector<128x512xbf16>, vector<8x512xf32> -> vector<8x512xf32>
    %179 = vector.broadcast %4 : f32 to vector<8x512xf32>
    %180 = arith.mulf %178, %179 : vector<8x512xf32>
    %c32 = arith.constant 32 : index
    %c0_58 = arith.constant 0 : index
    %181 = vector.load %arg15[%c32, %c0_58] : memref<64x512xf32, #tpu.memory_space<vmem>>, vector<8x512xf32>
    %182 = arith.addf %180, %181 : vector<8x512xf32>
    %183 = vector.extract_strided_slice %182 {offsets = [0, 0], sizes = [8, 128], strides = [1, 1]} : vector<8x512xf32> to vector<8x128xf32>
    %184 = arith.negf %183 : vector<8x128xf32>
    %185 = math.exp %184 : vector<8x128xf32>
    %cst_59 = arith.constant 1.000000e+00 : f32
    %186 = vector.broadcast %cst_59 : f32 to vector<8x128xf32>
    %187 = arith.addf %186, %185 : vector<8x128xf32>
    %188 = arith.divf %186, %187 : vector<8x128xf32>
    %189 = vector.extract_strided_slice %182 {offsets = [0, 128], sizes = [8, 128], strides = [1, 1]} : vector<8x512xf32> to vector<8x128xf32>
    %190 = arith.negf %189 : vector<8x128xf32>
    %191 = math.exp %190 : vector<8x128xf32>
    %cst_60 = arith.constant 1.000000e+00 : f32
    %192 = vector.broadcast %cst_60 : f32 to vector<8x128xf32>
    %193 = arith.addf %192, %191 : vector<8x128xf32>
    %194 = arith.divf %192, %193 : vector<8x128xf32>
    %195 = vector.extract_strided_slice %182 {offsets = [0, 256], sizes = [8, 128], strides = [1, 1]} : vector<8x512xf32> to vector<8x128xf32>
    %196 = math.tanh %195 : vector<8x128xf32>
    %197 = vector.extract_strided_slice %182 {offsets = [0, 384], sizes = [8, 128], strides = [1, 1]} : vector<8x512xf32> to vector<8x128xf32>
    %198 = arith.negf %197 : vector<8x128xf32>
    %199 = math.exp %198 : vector<8x128xf32>
    %cst_61 = arith.constant 1.000000e+00 : f32
    %200 = vector.broadcast %cst_61 : f32 to vector<8x128xf32>
    %201 = arith.addf %200, %199 : vector<8x128xf32>
    %202 = arith.divf %200, %201 : vector<8x128xf32>
    %203 = arith.mulf %194, %165 : vector<8x128xf32>
    %204 = arith.mulf %188, %196 : vector<8x128xf32>
    %205 = arith.addf %203, %204 : vector<8x128xf32>
    %206 = math.tanh %205 : vector<8x128xf32>
    %207 = arith.mulf %202, %206 : vector<8x128xf32>
    %208 = arith.truncf %207 : vector<8x128xf32> to vector<8x128xbf16>
    %c4 = arith.constant 4 : index
    %c0_62 = arith.constant 0 : index
    %c0_63 = arith.constant 0 : index
    %209 = vector.load %arg8[%c4, %c0_62, %c0_63] : memref<8x8x128xbf16, #tpu.memory_space<vmem>>, vector<1x8x128xbf16>
    %210 = vector.shape_cast %209 : vector<1x8x128xbf16> to vector<8x128xbf16>
    %211 = vector.shape_cast %208 : vector<8x128xbf16> to vector<1x8x128xbf16>
    tpu.vector_store %arg8[%c4, %c0_62, %c0_63], %211 {strides = array<i32>} : memref<8x8x128xbf16, #tpu.memory_space<vmem>>, vector<1x8x128xbf16>,
    %c8_i32_64 = arith.constant 8 : i32
    %212 = arith.muli %arg0, %c8_i32_64 : i32
    %c4_i32 = arith.constant 4 : i32
    %213 = arith.addi %212, %c4_i32 : i32
    %c7_i32_65 = arith.constant 7 : i32
    %214 = arith.cmpi eq, %213, %c7_i32_65 : i32
    %215 = arith.extui %214 : i1 to i32
    %c0_i32_66 = arith.constant 0 : i32
    %216 = arith.cmpi ne, %215, %c0_i32_66 : i32
    scf.if %216 {
      %c0_102 = arith.constant 0 : index
      %c0_103 = arith.constant 0 : index
      %339 = vector.load %arg9[%c0_102, %c0_103] : memref<8x128xf32, #tpu.memory_space<vmem>>, vector<8x128xf32>
      tpu.vector_store %arg9[%c0_102, %c0_103], %207 {strides = array<i32>} : memref<8x128xf32, #tpu.memory_space<vmem>>, vector<8x128xf32>,
      %c0_104 = arith.constant 0 : index
      %c0_105 = arith.constant 0 : index
      %340 = vector.load %arg10[%c0_104, %c0_105] : memref<8x128xf32, #tpu.memory_space<vmem>>, vector<8x128xf32>
      tpu.vector_store %arg10[%c0_104, %c0_105], %205 {strides = array<i32>} : memref<8x128xf32, #tpu.memory_space<vmem>>, vector<8x128xf32>,
    } else {
    }
    %217 = arith.truncf %207 : vector<8x128xf32> to vector<8x128xbf16>
    %cst_67 = arith.constant dense<0.000000e+00> : vector<8x512xf32>
    %218 = tpu.matmul %217, %14, %cst_67 {dimension_numbers = #tpu.dot_dimension_numbers<[1], [0], [0], [1], [0, 0, 1, 1], [], []>} : vector<8x128xbf16>, vector<128x512xbf16>, vector<8x512xf32> -> vector<8x512xf32>
    %219 = vector.broadcast %4 : f32 to vector<8x512xf32>
    %220 = arith.mulf %218, %219 : vector<8x512xf32>
    %c40 = arith.constant 40 : index
    %c0_68 = arith.constant 0 : index
    %221 = vector.load %arg15[%c40, %c0_68] : memref<64x512xf32, #tpu.memory_space<vmem>>, vector<8x512xf32>
    %222 = arith.addf %220, %221 : vector<8x512xf32>
    %223 = vector.extract_strided_slice %222 {offsets = [0, 0], sizes = [8, 128], strides = [1, 1]} : vector<8x512xf32> to vector<8x128xf32>
    %224 = arith.negf %223 : vector<8x128xf32>
    %225 = math.exp %224 : vector<8x128xf32>
    %cst_69 = arith.constant 1.000000e+00 : f32
    %226 = vector.broadcast %cst_69 : f32 to vector<8x128xf32>
    %227 = arith.addf %226, %225 : vector<8x128xf32>
    %228 = arith.divf %226, %227 : vector<8x128xf32>
    %229 = vector.extract_strided_slice %222 {offsets = [0, 128], sizes = [8, 128], strides = [1, 1]} : vector<8x512xf32> to vector<8x128xf32>
    %230 = arith.negf %229 : vector<8x128xf32>
    %231 = math.exp %230 : vector<8x128xf32>
    %cst_70 = arith.constant 1.000000e+00 : f32
    %232 = vector.broadcast %cst_70 : f32 to vector<8x128xf32>
    %233 = arith.addf %232, %231 : vector<8x128xf32>
    %234 = arith.divf %232, %233 : vector<8x128xf32>
    %235 = vector.extract_strided_slice %222 {offsets = [0, 256], sizes = [8, 128], strides = [1, 1]} : vector<8x512xf32> to vector<8x128xf32>
    %236 = math.tanh %235 : vector<8x128xf32>
    %237 = vector.extract_strided_slice %222 {offsets = [0, 384], sizes = [8, 128], strides = [1, 1]} : vector<8x512xf32> to vector<8x128xf32>
    %238 = arith.negf %237 : vector<8x128xf32>
    %239 = math.exp %238 : vector<8x128xf32>
    %cst_71 = arith.constant 1.000000e+00 : f32
    %240 = vector.broadcast %cst_71 : f32 to vector<8x128xf32>
    %241 = arith.addf %240, %239 : vector<8x128xf32>
    %242 = arith.divf %240, %241 : vector<8x128xf32>
    %243 = arith.mulf %234, %205 : vector<8x128xf32>
    %244 = arith.mulf %228, %236 : vector<8x128xf32>
    %245 = arith.addf %243, %244 : vector<8x128xf32>
    %246 = math.tanh %245 : vector<8x128xf32>
    %247 = arith.mulf %242, %246 : vector<8x128xf32>
    %248 = arith.truncf %247 : vector<8x128xf32> to vector<8x128xbf16>
    %c5 = arith.constant 5 : index
    %c0_72 = arith.constant 0 : index
    %c0_73 = arith.constant 0 : index
    %249 = vector.load %arg8[%c5, %c0_72, %c0_73] : memref<8x8x128xbf16, #tpu.memory_space<vmem>>, vector<1x8x128xbf16>
    %250 = vector.shape_cast %249 : vector<1x8x128xbf16> to vector<8x128xbf16>
    %251 = vector.shape_cast %248 : vector<8x128xbf16> to vector<1x8x128xbf16>
    tpu.vector_store %arg8[%c5, %c0_72, %c0_73], %251 {strides = array<i32>} : memref<8x8x128xbf16, #tpu.memory_space<vmem>>, vector<1x8x128xbf16>,
    %c8_i32_74 = arith.constant 8 : i32
    %252 = arith.muli %arg0, %c8_i32_74 : i32
    %c5_i32 = arith.constant 5 : i32
    %253 = arith.addi %252, %c5_i32 : i32
    %c7_i32_75 = arith.constant 7 : i32
    %254 = arith.cmpi eq, %253, %c7_i32_75 : i32
    %255 = arith.extui %254 : i1 to i32
    %c0_i32_76 = arith.constant 0 : i32
    %256 = arith.cmpi ne, %255, %c0_i32_76 : i32
    scf.if %256 {
      %c0_102 = arith.constant 0 : index
      %c0_103 = arith.constant 0 : index
      %339 = vector.load %arg9[%c0_102, %c0_103] : memref<8x128xf32, #tpu.memory_space<vmem>>, vector<8x128xf32>
      tpu.vector_store %arg9[%c0_102, %c0_103], %247 {strides = array<i32>} : memref<8x128xf32, #tpu.memory_space<vmem>>, vector<8x128xf32>,
      %c0_104 = arith.constant 0 : index
      %c0_105 = arith.constant 0 : index
      %340 = vector.load %arg10[%c0_104, %c0_105] : memref<8x128xf32, #tpu.memory_space<vmem>>, vector<8x128xf32>
      tpu.vector_store %arg10[%c0_104, %c0_105], %245 {strides = array<i32>} : memref<8x128xf32, #tpu.memory_space<vmem>>, vector<8x128xf32>,
    } else {
    }
    %257 = arith.truncf %247 : vector<8x128xf32> to vector<8x128xbf16>
    %cst_77 = arith.constant dense<0.000000e+00> : vector<8x512xf32>
    %258 = tpu.matmul %257, %14, %cst_77 {dimension_numbers = #tpu.dot_dimension_numbers<[1], [0], [0], [1], [0, 0, 1, 1], [], []>} : vector<8x128xbf16>, vector<128x512xbf16>, vector<8x512xf32> -> vector<8x512xf32>
    %259 = vector.broadcast %4 : f32 to vector<8x512xf32>
    %260 = arith.mulf %258, %259 : vector<8x512xf32>
    %c48 = arith.constant 48 : index
    %c0_78 = arith.constant 0 : index
    %261 = vector.load %arg15[%c48, %c0_78] : memref<64x512xf32, #tpu.memory_space<vmem>>, vector<8x512xf32>
    %262 = arith.addf %260, %261 : vector<8x512xf32>
    %263 = vector.extract_strided_slice %262 {offsets = [0, 0], sizes = [8, 128], strides = [1, 1]} : vector<8x512xf32> to vector<8x128xf32>
    %264 = arith.negf %263 : vector<8x128xf32>
    %265 = math.exp %264 : vector<8x128xf32>
    %cst_79 = arith.constant 1.000000e+00 : f32
    %266 = vector.broadcast %cst_79 : f32 to vector<8x128xf32>
    %267 = arith.addf %266, %265 : vector<8x128xf32>
    %268 = arith.divf %266, %267 : vector<8x128xf32>
    %269 = vector.extract_strided_slice %262 {offsets = [0, 128], sizes = [8, 128], strides = [1, 1]} : vector<8x512xf32> to vector<8x128xf32>
    %270 = arith.negf %269 : vector<8x128xf32>
    %271 = math.exp %270 : vector<8x128xf32>
    %cst_80 = arith.constant 1.000000e+00 : f32
    %272 = vector.broadcast %cst_80 : f32 to vector<8x128xf32>
    %273 = arith.addf %272, %271 : vector<8x128xf32>
    %274 = arith.divf %272, %273 : vector<8x128xf32>
    %275 = vector.extract_strided_slice %262 {offsets = [0, 256], sizes = [8, 128], strides = [1, 1]} : vector<8x512xf32> to vector<8x128xf32>
    %276 = math.tanh %275 : vector<8x128xf32>
    %277 = vector.extract_strided_slice %262 {offsets = [0, 384], sizes = [8, 128], strides = [1, 1]} : vector<8x512xf32> to vector<8x128xf32>
    %278 = arith.negf %277 : vector<8x128xf32>
    %279 = math.exp %278 : vector<8x128xf32>
    %cst_81 = arith.constant 1.000000e+00 : f32
    %280 = vector.broadcast %cst_81 : f32 to vector<8x128xf32>
    %281 = arith.addf %280, %279 : vector<8x128xf32>
    %282 = arith.divf %280, %281 : vector<8x128xf32>
    %283 = arith.mulf %274, %245 : vector<8x128xf32>
    %284 = arith.mulf %268, %276 : vector<8x128xf32>
    %285 = arith.addf %283, %284 : vector<8x128xf32>
    %286 = math.tanh %285 : vector<8x128xf32>
    %287 = arith.mulf %282, %286 : vector<8x128xf32>
    %288 = arith.truncf %287 : vector<8x128xf32> to vector<8x128xbf16>
    %c6 = arith.constant 6 : index
    %c0_82 = arith.constant 0 : index
    %c0_83 = arith.constant 0 : index
    %289 = vector.load %arg8[%c6, %c0_82, %c0_83] : memref<8x8x128xbf16, #tpu.memory_space<vmem>>, vector<1x8x128xbf16>
    %290 = vector.shape_cast %289 : vector<1x8x128xbf16> to vector<8x128xbf16>
    %291 = vector.shape_cast %288 : vector<8x128xbf16> to vector<1x8x128xbf16>
    tpu.vector_store %arg8[%c6, %c0_82, %c0_83], %291 {strides = array<i32>} : memref<8x8x128xbf16, #tpu.memory_space<vmem>>, vector<1x8x128xbf16>,
    %c8_i32_84 = arith.constant 8 : i32
    %292 = arith.muli %arg0, %c8_i32_84 : i32
    %c6_i32 = arith.constant 6 : i32
    %293 = arith.addi %292, %c6_i32 : i32
    %c7_i32_85 = arith.constant 7 : i32
    %294 = arith.cmpi eq, %293, %c7_i32_85 : i32
    %295 = arith.extui %294 : i1 to i32
    %c0_i32_86 = arith.constant 0 : i32
    %296 = arith.cmpi ne, %295, %c0_i32_86 : i32
    scf.if %296 {
      %c0_102 = arith.constant 0 : index
      %c0_103 = arith.constant 0 : index
      %339 = vector.load %arg9[%c0_102, %c0_103] : memref<8x128xf32, #tpu.memory_space<vmem>>, vector<8x128xf32>
      tpu.vector_store %arg9[%c0_102, %c0_103], %287 {strides = array<i32>} : memref<8x128xf32, #tpu.memory_space<vmem>>, vector<8x128xf32>,
      %c0_104 = arith.constant 0 : index
      %c0_105 = arith.constant 0 : index
      %340 = vector.load %arg10[%c0_104, %c0_105] : memref<8x128xf32, #tpu.memory_space<vmem>>, vector<8x128xf32>
      tpu.vector_store %arg10[%c0_104, %c0_105], %285 {strides = array<i32>} : memref<8x128xf32, #tpu.memory_space<vmem>>, vector<8x128xf32>,
    } else {
    }
    %297 = arith.truncf %287 : vector<8x128xf32> to vector<8x128xbf16>
    %cst_87 = arith.constant dense<0.000000e+00> : vector<8x512xf32>
    %298 = tpu.matmul %297, %14, %cst_87 {dimension_numbers = #tpu.dot_dimension_numbers<[1], [0], [0], [1], [0, 0, 1, 1], [], []>} : vector<8x128xbf16>, vector<128x512xbf16>, vector<8x512xf32> -> vector<8x512xf32>
    %299 = vector.broadcast %4 : f32 to vector<8x512xf32>
    %300 = arith.mulf %298, %299 : vector<8x512xf32>
    %c56 = arith.constant 56 : index
    %c0_88 = arith.constant 0 : index
    %301 = vector.load %arg15[%c56, %c0_88] : memref<64x512xf32, #tpu.memory_space<vmem>>, vector<8x512xf32>
    %302 = arith.addf %300, %301 : vector<8x512xf32>
    %303 = vector.extract_strided_slice %302 {offsets = [0, 0], sizes = [8, 128], strides = [1, 1]} : vector<8x512xf32> to vector<8x128xf32>
    %304 = arith.negf %303 : vector<8x128xf32>
    %305 = math.exp %304 : vector<8x128xf32>
    %cst_89 = arith.constant 1.000000e+00 : f32
    %306 = vector.broadcast %cst_89 : f32 to vector<8x128xf32>
    %307 = arith.addf %306, %305 : vector<8x128xf32>
    %308 = arith.divf %306, %307 : vector<8x128xf32>
    %309 = vector.extract_strided_slice %302 {offsets = [0, 128], sizes = [8, 128], strides = [1, 1]} : vector<8x512xf32> to vector<8x128xf32>
    %310 = arith.negf %309 : vector<8x128xf32>
    %311 = math.exp %310 : vector<8x128xf32>
    %cst_90 = arith.constant 1.000000e+00 : f32
    %312 = vector.broadcast %cst_90 : f32 to vector<8x128xf32>
    %313 = arith.addf %312, %311 : vector<8x128xf32>
    %314 = arith.divf %312, %313 : vector<8x128xf32>
    %315 = vector.extract_strided_slice %302 {offsets = [0, 256], sizes = [8, 128], strides = [1, 1]} : vector<8x512xf32> to vector<8x128xf32>
    %316 = math.tanh %315 : vector<8x128xf32>
    %317 = vector.extract_strided_slice %302 {offsets = [0, 384], sizes = [8, 128], strides = [1, 1]} : vector<8x512xf32> to vector<8x128xf32>
    %318 = arith.negf %317 : vector<8x128xf32>
    %319 = math.exp %318 : vector<8x128xf32>
    %cst_91 = arith.constant 1.000000e+00 : f32
    %320 = vector.broadcast %cst_91 : f32 to vector<8x128xf32>
    %321 = arith.addf %320, %319 : vector<8x128xf32>
    %322 = arith.divf %320, %321 : vector<8x128xf32>
    %323 = arith.mulf %314, %285 : vector<8x128xf32>
    %324 = arith.mulf %308, %316 : vector<8x128xf32>
    %325 = arith.addf %323, %324 : vector<8x128xf32>
    %326 = math.tanh %325 : vector<8x128xf32>
    %327 = arith.mulf %322, %326 : vector<8x128xf32>
    %328 = arith.truncf %327 : vector<8x128xf32> to vector<8x128xbf16>
    %c7 = arith.constant 7 : index
    %c0_92 = arith.constant 0 : index
    %c0_93 = arith.constant 0 : index
    %329 = vector.load %arg8[%c7, %c0_92, %c0_93] : memref<8x8x128xbf16, #tpu.memory_space<vmem>>, vector<1x8x128xbf16>
    %330 = vector.shape_cast %329 : vector<1x8x128xbf16> to vector<8x128xbf16>
    %331 = vector.shape_cast %328 : vector<8x128xbf16> to vector<1x8x128xbf16>
    tpu.vector_store %arg8[%c7, %c0_92, %c0_93], %331 {strides = array<i32>} : memref<8x8x128xbf16, #tpu.memory_space<vmem>>, vector<1x8x128xbf16>,
    %c8_i32_94 = arith.constant 8 : i32
    %332 = arith.muli %arg0, %c8_i32_94 : i32
    %c7_i32_95 = arith.constant 7 : i32
    %333 = arith.addi %332, %c7_i32_95 : i32
    %c7_i32_96 = arith.constant 7 : i32
    %334 = arith.cmpi eq, %333, %c7_i32_96 : i32
    %335 = arith.extui %334 : i1 to i32
    %c0_i32_97 = arith.constant 0 : i32
    %336 = arith.cmpi ne, %335, %c0_i32_97 : i32
    scf.if %336 {
      %c0_102 = arith.constant 0 : index
      %c0_103 = arith.constant 0 : index
      %339 = vector.load %arg9[%c0_102, %c0_103] : memref<8x128xf32, #tpu.memory_space<vmem>>, vector<8x128xf32>
      tpu.vector_store %arg9[%c0_102, %c0_103], %327 {strides = array<i32>} : memref<8x128xf32, #tpu.memory_space<vmem>>, vector<8x128xf32>,
      %c0_104 = arith.constant 0 : index
      %c0_105 = arith.constant 0 : index
      %340 = vector.load %arg10[%c0_104, %c0_105] : memref<8x128xf32, #tpu.memory_space<vmem>>, vector<8x128xf32>
      tpu.vector_store %arg10[%c0_104, %c0_105], %325 {strides = array<i32>} : memref<8x128xf32, #tpu.memory_space<vmem>>, vector<8x128xf32>,
    } else {
    }
    %c0_98 = arith.constant 0 : index
    %c0_99 = arith.constant 0 : index
    %337 = vector.load %arg11[%c0_98, %c0_99] : memref<8x128xf32, #tpu.memory_space<vmem>>, vector<8x128xf32>
    tpu.vector_store %arg11[%c0_98, %c0_99], %327 {strides = array<i32>} : memref<8x128xf32, #tpu.memory_space<vmem>>, vector<8x128xf32>,
    %c0_100 = arith.constant 0 : index
    %c0_101 = arith.constant 0 : index
    %338 = vector.load %arg12[%c0_100, %c0_101] : memref<8x128xf32, #tpu.memory_space<vmem>>, vector<8x128xf32>
    tpu.vector_store %arg12[%c0_100, %c0_101], %325 {strides = array<i32>} : memref<8x128xf32, #tpu.memory_space<vmem>>, vector<8x128xf32>,
    return
  }
  func.func @transform_0(%arg0: i32) -> i32 {
    %c0_i32 = arith.constant 0 : i32
    %c0_i32_0 = arith.constant 0 : i32
    return %c0_i32 : i32
  }
  func.func @transform_1(%arg0: i32) -> (i32, i32) {
    %c0_i32 = arith.constant 0 : i32
    %c0_i32_0 = arith.constant 0 : i32
    return %arg0, %c0_i32 : i32, i32
  }
  func.func @transform_2(%arg0: i32) -> (i32, i32) {
    %c0_i32 = arith.constant 0 : i32
    %c0_i32_0 = arith.constant 0 : i32
    %c0_i32_1 = arith.constant 0 : i32
    return %c0_i32, %c0_i32_0 : i32, i32
  }
  func.func @transform_3(%arg0: i32) -> (i32, i32) {
    %c0_i32 = arith.constant 0 : i32
    %c0_i32_0 = arith.constant 0 : i32
    %c0_i32_1 = arith.constant 0 : i32
    return %c0_i32, %c0_i32_0 : i32, i32
  }
  func.func @transform_4(%arg0: i32) -> (i32, i32) {
    %c0_i32 = arith.constant 0 : i32
    %c0_i32_0 = arith.constant 0 : i32
    %c0_i32_1 = arith.constant 0 : i32
    return %c0_i32, %c0_i32_0 : i32, i32
  }
  func.func @transform_5(%arg0: i32) -> (i32, i32) {
    %c0_i32 = arith.constant 0 : i32
    %c0_i32_0 = arith.constant 0 : i32
    %c0_i32_1 = arith.constant 0 : i32
    return %c0_i32, %c0_i32_0 : i32, i32
  }
  func.func @transform_6(%arg0: i32) -> (i32, i32) {
    %c0_i32 = arith.constant 0 : i32
    %c0_i32_0 = arith.constant 0 : i32
    %c0_i32_1 = arith.constant 0 : i32
    return %c0_i32, %c0_i32_0 : i32, i32
  }
  func.func @transform_7(%arg0: i32) -> (i32, i32, i32) {
    %c0_i32 = arith.constant 0 : i32
    %c0_i32_0 = arith.constant 0 : i32
    %c0_i32_1 = arith.constant 0 : i32
    return %arg0, %c0_i32, %c0_i32_0 : i32, i32, i32
  }
  func.func @transform_8(%arg0: i32) -> (i32, i32) {
    %c0_i32 = arith.constant 0 : i32
    %c0_i32_0 = arith.constant 0 : i32
    %c0_i32_1 = arith.constant 0 : i32
    return %c0_i32, %c0_i32_0 : i32, i32
  }
  func.func @transform_9(%arg0: i32) -> (i32, i32) {
    %c0_i32 = arith.constant 0 : i32
    %c0_i32_0 = arith.constant 0 : i32
    %c0_i32_1 = arith.constant 0 : i32
    return %c0_i32, %c0_i32_0 : i32, i32
  }
}

</mosaic_0001>

<llo_original>
// kernel: tpu_custom_call.1
$region0: #{tpu_custom_call.1}
  #allocation0 [shape = 'u32[]', space=smem, size = 0x4, offset = 0x4, fixed_abs, tag = 'smem constant byte address 0x4 - core index']
  #allocation1 [shape = 'u32[144,128]{1,0:T(1,128)}', space=vmem, size = 0x12000, scoped, tag = 'internal scratch']
  #allocation2 [shape = 'f32[8,128]{1,0:T(8,128)}', space=vmem, size = 0x1000, scoped, tag = 'scratch operand']
  #allocation3 [shape = 'f32[8,128]{1,0:T(8,128)}', space=vmem, size = 0x1000, scoped, tag = 'scratch operand']
  #allocation4 [shape = 'bf16[16,512]{1,0:T(16,128)(2,1)}', space=vmem, size = 0x4000, scoped, tag = 'scratch operand']
  #allocation5 [shape = 'bf16[128,512]{1,0:T(16,128)(2,1)}', space=vmem, size = 0x20000, scoped, tag = 'scratch operand']
  #allocation6 [shape = 'f32[64,512]{1,0:T(8,128)}', space=vmem, size = 0x20000, scoped, tag = 'scratch operand']
  %s0 = inlined_call_operand.vmem [shape: f32[2], index: 0, kind: input, shape index: {}]
  %s1 = inlined_call_operand.vmem [shape: bf16[64,16], index: 1, kind: input, shape index: {}]
  %s2 = inlined_call_operand.vmem [shape: s8[16,512], index: 2, kind: input, shape index: {}]
  %s3 = inlined_call_operand.hbm [shape: s8[128,512], index: 3, kind: input, shape index: {}]
  %s4 = inlined_call_operand.vmem [shape: f32[1,512], index: 4, kind: input, shape index: {}]
  %s5 = inlined_call_operand.vmem [shape: f32[8,128], index: 5, kind: input, shape index: {}]
  %s6 = inlined_call_operand.vmem [shape: f32[8,128], index: 6, kind: input, shape index: {}]
  %s7 = inlined_call_operand.hbm [shape: bf16[8,8,128], index: 7, kind: output, shape index: {0}]
  %s8 = inlined_call_operand.hbm [shape: f32[8,128], index: 8, kind: output, shape index: {1}]
  %s9 = inlined_call_operand.hbm [shape: f32[8,128], index: 9, kind: output, shape index: {2}]
  %10 = xla_tuple %s7, %s8, %s9
  %s11 = sld [smem:[#allocation0]]
  $region98: #{tpu_custom_call.1} parent=0
    _
  %s13 = ssub.s32 1, %s11
  %s14 = scalar_select 0, %s13, %s11
  $region1: #{tpu_custom_call.1} parent=0
    #allocation7 [shape = 'u8[512]{0}', space=smem, size = 0x200, scoped, tag = 'input window, operand 0, single buffered']
    #allocation8 [shape = 's32[1]{0}', space=sflag, size = 0x4, scoped, tag = 'scoped memory for tpu_custom_call.1']
    #allocation9 [shape = 's32[1]{0}', space=sflag, size = 0x4, scoped, tag = 'scoped memory for tpu_custom_call.1']
    #allocation10 [shape = 's32[1]{0}', space=sflag, size = 0x4, scoped, tag = 'scoped memory for tpu_custom_call.1']
    #allocation11 [shape = 'u8[65536]{0}', space=vmem, size = 0x10000, scoped, tag = 'input window, operand 3, single buffered']
    #allocation12 [shape = 'u8[16384]{0}', space=vmem, size = 0x4000, scoped, tag = 'output window, operand 0, single buffered']
    #allocation13 [shape = 'u8[4096]{0}', space=vmem, size = 0x1000, scoped, tag = 'output window, operand 1, single buffered']
    #allocation14 [shape = 's32[1]{0}', space=sflag, size = 0x4, scoped, tag = 'scoped memory for tpu_custom_call.1']
    #allocation15 [shape = 'u8[4096]{0}', space=vmem, size = 0x1000, scoped, tag = 'output window, operand 2, single buffered']
    %15 = vsyncpa [#allocation10], 0
    %16 = vsyncpa [#allocation8], 0
    %17 = vsyncpa [#allocation9], 0
    %18 = vsyncpa [#allocation14], 0
    // Predicated region
    $region2: #{tpu_custom_call.1} parent=1 // pred_check
      _
    $region3: #{tpu_custom_call.1} parent=1 // pred_check_branch
      %20 = sbr.rel (0) target = $region5
    $region4: #{tpu_custom_call.1} parent=1 // pred_region
      %s22 = ssub.s32 16, 16
      %23 = vsyncadd [#allocation10], %s22
      %s25 = sshll.u32 %s0, 4
      %s26 = int_to_ptr.vmem [resolvable:$true] %s25
      %28 = dma.vmem_to_smem %s26, 16, [#allocation7], [#allocation10]
    $region5: #{tpu_custom_call.1} parent=1 // pred_fallthru
      _
    // Predicated region
    $region6: #{tpu_custom_call.1} parent=1 // pred_check
      _
    $region7: #{tpu_custom_call.1} parent=1 // pred_check_branch
      %30 = sbr.rel (0) target = $region9
    $region8: #{tpu_custom_call.1} parent=1 // pred_region
      _
    $region9: #{tpu_custom_call.1} parent=1 // pred_fallthru
      _
    // Predicated region
    $region10: #{tpu_custom_call.1} parent=1 // pred_check
      _
    $region11: #{tpu_custom_call.1} parent=1 // pred_check_branch
      %32 = sbr.rel (0) target = $region13
    $region12: #{tpu_custom_call.1} parent=1 // pred_region
      _
    $region13: #{tpu_custom_call.1} parent=1 // pred_fallthru
      _
    // Predicated region
    $region14: #{tpu_custom_call.1} parent=1 // pred_check
      _
    $region15: #{tpu_custom_call.1} parent=1 // pred_check_branch
      %34 = sbr.rel (0) target = $region17
    $region16: #{tpu_custom_call.1} parent=1 // pred_region
      %s36 = ssub.s32 2048, 2048
      %37 = vsyncadd [#allocation8], %s36
      %s38 = sshll.u32 [#allocation11], 4
      %s39 = int_to_ptr.vmem [resolvable:$true] %s38
      %44 = dma.hbm_to_vmem [thread:$0]  %s3, 2048, %s39, [#allocation8], 512, 512, 32
    $region17: #{tpu_custom_call.1} parent=1 // pred_fallthru
      _
    // Predicated region
    $region18: #{tpu_custom_call.1} parent=1 // pred_check
      _
    $region19: #{tpu_custom_call.1} parent=1 // pred_check_branch
      %46 = sbr.rel (0) target = $region21
    $region20: #{tpu_custom_call.1} parent=1 // pred_region
      _
    $region21: #{tpu_custom_call.1} parent=1 // pred_fallthru
      _
    // Predicated region
    $region22: #{tpu_custom_call.1} parent=1 // pred_check
      _
    $region23: #{tpu_custom_call.1} parent=1 // pred_check_branch
      %48 = sbr.rel (0) target = $region25
    $region24: #{tpu_custom_call.1} parent=1 // pred_region
      _
    $region25: #{tpu_custom_call.1} parent=1 // pred_fallthru
      _
    // Predicated region
    $region26: #{tpu_custom_call.1} parent=1 // pred_check
      _
    $region27: #{tpu_custom_call.1} parent=1 // pred_check_branch
      %50 = sbr.rel (0) target = $region29
    $region28: #{tpu_custom_call.1} parent=1 // pred_region
      _
    $region29: #{tpu_custom_call.1} parent=1 // pred_fallthru
      _
    // Predicated region
    $region30: #{tpu_custom_call.1} parent=1 // pred_check
      _
    $region31: #{tpu_custom_call.1} parent=1 // pred_check_branch
      %52 = sbr.rel (0) target = $region33
    $region32: #{tpu_custom_call.1} parent=1 // pred_region
      %53 = dma.done [#allocation10], 16
    $region33: #{tpu_custom_call.1} parent=1 // pred_fallthru
      _
    // Predicated region
    $region34: #{tpu_custom_call.1} parent=1 // pred_check
      _
    $region35: #{tpu_custom_call.1} parent=1 // pred_check_branch
      %55 = sbr.rel (0) target = $region37
    $region36: #{tpu_custom_call.1} parent=1 // pred_region
      %56 = dma.done [#allocation8], 2048
    $region37: #{tpu_custom_call.1} parent=1 // pred_fallthru
      _
    %57 = sfence
    %p59 = scmp.eq.s32.totalorder 0, 0
    // Predicated region
    $region38: #{tpu_custom_call.1} parent=1 // pred_check
      %p60 = pneg %p59
    $region39: #{tpu_custom_call.1} parent=1 // pred_check_branch
      %62 = sbr.rel (%p60) target = $region41
    $region40: #{tpu_custom_call.1} parent=1 // pred_region
      %v63 = vld [vmem:[%s5] sm:$0xff]
      %64 = vst [vmem:[#allocation2] sm:$0xff] %v63
      %v65 = vld [vmem:[%s6] sm:$0xff]
      %66 = vst [vmem:[#allocation3] sm:$0xff] %v65
      %v67 = vld [vmem:[%s2] sm:$0xff]
      %v68 = vld [vmem:[%s2 + $0x8] sm:$0xff]
      %v69 = vunpack.c.l.s8.bf16 %v67
      %v70 = vunpack.c.h.s8.bf16 %v67
      %v71 = vunpack.c.l.s8.bf16 %v68
      %v72 = vunpack.c.h.s8.bf16 %v68
      %v77 = vunpack.c.l.b16 %v69
      %v78 = vunpack.c.h.b16 %v69
      %v79 = vunpack.c.l.b16 %v70
      %v80 = vunpack.c.h.b16 %v70
      %v81 = vunpack.c.l.b16 %v71
      %v82 = vunpack.c.h.b16 %v71
      %v83 = vunpack.c.l.b16 %v72
      %v84 = vunpack.c.h.b16 %v72
      %v85 = vpack.c.b16 %v81, %v77
      %v86 = vpack.c.b16 %v82, %v78
      %v87 = vpack.c.b16 %v83, %v79
      %v88 = vpack.c.b16 %v84, %v80
      %93 = vst [vmem:[#allocation4] sm:$0xff] %v85
      %94 = vst [vmem:[#allocation4 + $0x8] sm:$0xff] %v86
      %95 = vst [vmem:[#allocation4 + $0x10] sm:$0xff] %v87
      %96 = vst [vmem:[#allocation4 + $0x18] sm:$0xff] %v88
      %v97 = vld [vmem:[#allocation11] sm:$0xff]
      %v98 = vld [vmem:[#allocation11 + $0x8] sm:$0xff]
      %v99 = vld [vmem:[#allocation11 + $0x10] sm:$0xff]
      %v100 = vld [vmem:[#allocation11 + $0x18] sm:$0xff]
      %v101 = vld [vmem:[#allocation11 + $0x20] sm:$0xff]
      %v102 = vld [vmem:[#allocation11 + $0x28] sm:$0xff]
      %v103 = vld [vmem:[#allocation11 + $0x30] sm:$0xff]
      %v104 = vld [vmem:[#allocation11 + $0x38] sm:$0xff]
      %v105 = vld [vmem:[#allocation11 + $0x40] sm:$0xff]
      %v106 = vld [vmem:[#allocation11 + $0x48] sm:$0xff]
      %v107 = vld [vmem:[#allocation11 + $0x50] sm:$0xff]
      %v108 = vld [vmem:[#allocation11 + $0x58] sm:$0xff]
      %v109 = vld [vmem:[#allocation11 + $0x60] sm:$0xff]
      %v110 = vld [vmem:[#allocation11 + $0x68] sm:$0xff]
      %v111 = vld [vmem:[#allocation11 + $0x70] sm:$0xff]
      %v112 = vld [vmem:[#allocation11 + $0x78] sm:$0xff]
      %v113 = vunpack.c.l.s8.bf16 %v97
      %v114 = vunpack.c.l.s8.bf16 %v98
      %v115 = vunpack.c.l.s8.bf16 %v99
      %v116 = vunpack.c.l.s8.bf16 %v100
      %v117 = vunpack.c.h.s8.bf16 %v97
      %v118 = vunpack.c.h.s8.bf16 %v98
      %v119 = vunpack.c.h.s8.bf16 %v99
      %v120 = vunpack.c.h.s8.bf16 %v100
      %v121 = vunpack.c.l.s8.bf16 %v101
      %v122 = vunpack.c.l.s8.bf16 %v102
      %v123 = vunpack.c.l.s8.bf16 %v103
      %v124 = vunpack.c.l.s8.bf16 %v104
      %v125 = vunpack.c.h.s8.bf16 %v101
      %v126 = vunpack.c.h.s8.bf16 %v102
      %v127 = vunpack.c.h.s8.bf16 %v103
      %v128 = vunpack.c.h.s8.bf16 %v104
      %v129 = vunpack.c.l.s8.bf16 %v105
      %v130 = vunpack.c.l.s8.bf16 %v106
      %v131 = vunpack.c.l.s8.bf16 %v107
      %v132 = vunpack.c.l.s8.bf16 %v108
      %v133 = vunpack.c.h.s8.bf16 %v105
      %v134 = vunpack.c.h.s8.bf16 %v106
      %v135 = vunpack.c.h.s8.bf16 %v107
      %v136 = vunpack.c.h.s8.bf16 %v108
      %v137 = vunpack.c.l.s8.bf16 %v109
      %v138 = vunpack.c.l.s8.bf16 %v110
      %v139 = vunpack.c.l.s8.bf16 %v111
      %v140 = vunpack.c.l.s8.bf16 %v112
      %v141 = vunpack.c.h.s8.bf16 %v109
      %v142 = vunpack.c.h.s8.bf16 %v110
      %v143 = vunpack.c.h.s8.bf16 %v111
      %v144 = vunpack.c.h.s8.bf16 %v112
      %145 = vst [vmem:[#allocation5] sm:$0xff] %v113
      %146 = vst [vmem:[#allocation5 + $0x8] sm:$0xff] %v114
      %147 = vst [vmem:[#allocation5 + $0x10] sm:$0xff] %v115
      %148 = vst [vmem:[#allocation5 + $0x18] sm:$0xff] %v116
      %149 = vst [vmem:[#allocation5 + $0x20] sm:$0xff] %v117
      %150 = vst [vmem:[#allocation5 + $0x28] sm:$0xff] %v118
      %151 = vst [vmem:[#allocation5 + $0x30] sm:$0xff] %v119
      %152 = vst [vmem:[#allocation5 + $0x38] sm:$0xff] %v120
      %153 = vst [vmem:[#allocation5 + $0x40] sm:$0xff] %v121
      %154 = vst [vmem:[#allocation5 + $0x48] sm:$0xff] %v122
      %155 = vst [vmem:[#allocation5 + $0x50] sm:$0xff] %v123
      %156 = vst [vmem:[#allocation5 + $0x58] sm:$0xff] %v124
      %157 = vst [vmem:[#allocation5 + $0x60] sm:$0xff] %v125
      %158 = vst [vmem:[#allocation5 + $0x68] sm:$0xff] %v126
      %159 = vst [vmem:[#allocation5 + $0x70] sm:$0xff] %v127
      %160 = vst [vmem:[#allocation5 + $0x78] sm:$0xff] %v128
      %161 = vst [vmem:[#allocation5 + $0x80] sm:$0xff] %v129
      %162 = vst [vmem:[#allocation5 + $0x88] sm:$0xff] %v130
      %163 = vst [vmem:[#allocation5 + $0x90] sm:$0xff] %v131
      %164 = vst [vmem:[#allocation5 + $0x98] sm:$0xff] %v132
      %165 = vst [vmem:[#allocation5 + $0xa0] sm:$0xff] %v133
      %166 = vst [vmem:[#allocation5 + $0xa8] sm:$0xff] %v134
      %167 = vst [vmem:[#allocation5 + $0xb0] sm:$0xff] %v135
      %168 = vst [vmem:[#allocation5 + $0xb8] sm:$0xff] %v136
      %169 = vst [vmem:[#allocation5 + $0xc0] sm:$0xff] %v137
      %170 = vst [vmem:[#allocation5 + $0xc8] sm:$0xff] %v138
      %171 = vst [vmem:[#allocation5 + $0xd0] sm:$0xff] %v139
      %172 = vst [vmem:[#allocation5 + $0xd8] sm:$0xff] %v140
      %173 = vst [vmem:[#allocation5 + $0xe0] sm:$0xff] %v141
      %174 = vst [vmem:[#allocation5 + $0xe8] sm:$0xff] %v142
      %175 = vst [vmem:[#allocation5 + $0xf0] sm:$0xff] %v143
      %176 = vst [vmem:[#allocation5 + $0xf8] sm:$0xff] %v144
    $region41: #{tpu_custom_call.1} parent=1 // pred_fallthru
      _
    %s177 = sld [smem:[#allocation7]]
    %s178 = sld [smem:[#allocation7 + $0x1]]
    %v179 = vld [vmem:[%s1] sm:$0xf]
    %v180 = vld [vmem:[%s1 + $0x4] sm:$0xf]
    %v181 = vld [vmem:[%s1 + $0x8] sm:$0xf]
    %v182 = vld [vmem:[%s1 + $0xc] sm:$0xf]
    %v183 = vld [vmem:[%s1 + $0x10] sm:$0xf]
    %v184 = vld [vmem:[%s1 + $0x14] sm:$0xf]
    %v185 = vld [vmem:[%s1 + $0x18] sm:$0xf]
    %v186 = vld [vmem:[%s1 + $0x1c] sm:$0xf]
    %v187 = vld [vmem:[#allocation4] sm:$0xff]
    %v188 = vld [vmem:[#allocation4 + $0x8] sm:$0xff]
    %v189 = vld [vmem:[#allocation4 + $0x10] sm:$0xff]
    %v190 = vld [vmem:[#allocation4 + $0x18] sm:$0xff]
    %v199 = vunpack.c.l.b16 %v179
    %v200 = vunpack.c.l.b16 %v180
    %v201 = vunpack.c.l.b16 %v181
    %v202 = vunpack.c.l.b16 %v182
    %v203 = vunpack.c.l.b16 %v183
    %v204 = vunpack.c.l.b16 %v184
    %v205 = vunpack.c.l.b16 %v185
    %v206 = vunpack.c.l.b16 %v186
    %v207 = vpack.c.b16 %v200, %v199
    %v208 = vpack.c.b16 %v202, %v201
    %v209 = vpack.c.b16 %v204, %v203
    %v210 = vpack.c.b16 %v206, %v205
    %vm211 = vcmask 130048
    %v213 = vsel %vm211, %v207, 0
    %v216 = vsel %vm211, %v208, 0
    %v219 = vsel %vm211, %v209, 0
    %v222 = vsel %vm211, %v210, 0
    %224 = vmatprep.subr.bf16.mxu0 %v188
    %225 = vmatpush1.bf16.msra.mxu0 %v187
    %226 = vmatprep.subr.bf16.mxu0 0
    %227 = vmatpush1.bf16.msra.mxu0 0
    %228 = vmatprep.subr.bf16.mxu0 0
    %229 = vmatpush1.bf16.msra.mxu0 0
    %230 = vmatprep.subr.bf16.mxu0 0
    %231 = vmatpush1.bf16.msra.mxu0 0
    %232 = vmatprep.subr.bf16.mxu0 0
    %233 = vmatpush1.bf16.msra.mxu0 0
    %234 = vmatprep.subr.bf16.mxu0 0
    %235 = vmatpush1.bf16.msra.mxu0 0
    %236 = vmatprep.subr.bf16.mxu0 0
    %237 = vmatpush1.bf16.msra.mxu0 0
    %238 = vmatprep.subr.bf16.mxu0 0
    %239 = vmatpush1.bf16.msra.mxu0 0
    %240 = vmatprep.subr.bf16.mxu0 0
    %241 = vmatpush1.bf16.msra.mxu0 0
    %242 = vmatprep.subr.bf16.mxu0 0
    %243 = vmatpush1.bf16.msra.mxu0 0
    %244 = vmatprep.subr.bf16.mxu0 0
    %245 = vmatpush1.bf16.msra.mxu0 0
    %246 = vmatprep.subr.bf16.mxu0 0
    %247 = vmatpush1.bf16.msra.mxu0 0
    %248 = vmatprep.subr.bf16.mxu0 0
    %249 = vmatpush1.bf16.msra.mxu0 0
    %250 = vmatprep.subr.bf16.mxu0 0
    %251 = vmatpush1.bf16.msra.mxu0 0
    %252 = vmatprep.subr.bf16.mxu0 0
    %253 = vmatpush1.bf16.msra.mxu0 0
    %254 = vmatprep.subr.bf16.mxu0 0
    %255 = vmatpush1.bf16.msra.mxu0 0
    %256 = vmatprep.mubr.bf16.mxu0 0
    %257 = vmatmul.mubr.bf16.gmra.mrb[0].mxu0 %v213
    %v258 = vpop.f32.mrb[0].mxu0
    %v259 = vadd.f32 0.0, %v258
    %v260 = vpop.f32.mrb[0].mxu0
    %v261 = vadd.f32 0.0, %v260
    %v262 = vpop.f32.mrb[0].mxu0
    %v263 = vadd.f32 0.0, %v262
    %v264 = vpop.f32.mrb[0].mxu0
    %v265 = vadd.f32 0.0, %v264
    %266 = vmatprep.mubr.bf16.mxu0 0
    %267 = vmatmul.mubr.bf16.gmra.mrb[0].mxu0 %v216
    %v268 = vpop.f32.mrb[0].mxu0
    %v269 = vadd.f32 0.0, %v268
    %v270 = vpop.f32.mrb[0].mxu0
    %v271 = vadd.f32 0.0, %v270
    %v272 = vpop.f32.mrb[0].mxu0
    %v273 = vadd.f32 0.0, %v272
    %v274 = vpop.f32.mrb[0].mxu0
    %v275 = vadd.f32 0.0, %v274
    %276 = vmatprep.mubr.bf16.mxu0 0
    %277 = vmatmul.mubr.bf16.gmra.mrb[0].mxu0 %v219
    %v278 = vpop.f32.mrb[0].mxu0
    %v279 = vadd.f32 0.0, %v278
    %v280 = vpop.f32.mrb[0].mxu0
    %v281 = vadd.f32 0.0, %v280
    %v282 = vpop.f32.mrb[0].mxu0
    %v283 = vadd.f32 0.0, %v282
    %v284 = vpop.f32.mrb[0].mxu0
    %v285 = vadd.f32 0.0, %v284
    %286 = vmatprep.mubr.bf16.mxu0 0
    %287 = vmatmul.mubr.bf16.gmra.mrb[0].mxu0 %v222
    %v288 = vpop.f32.mrb[0].mxu0
    %v289 = vadd.f32 0.0, %v288
    %v290 = vpop.f32.mrb[0].mxu0
    %v291 = vadd.f32 0.0, %v290
    %v292 = vpop.f32.mrb[0].mxu0
    %v293 = vadd.f32 0.0, %v292
    %v294 = vpop.f32.mrb[0].mxu0
    %v295 = vadd.f32 0.0, %v294
    %296 = vdwg.mxu0
    %297 = vmatprep.subr.bf16.mxu0 %v190
    %298 = vmatpush1.bf16.msra.mxu0 %v189
    %299 = vmatprep.subr.bf16.mxu0 0
    %300 = vmatpush1.bf16.msra.mxu0 0
    %301 = vmatprep.subr.bf16.mxu0 0
    %302 = vmatpush1.bf16.msra.mxu0 0
    %303 = vmatprep.subr.bf16.mxu0 0
    %304 = vmatpush1.bf16.msra.mxu0 0
    %305 = vmatprep.subr.bf16.mxu0 0
    %306 = vmatpush1.bf16.msra.mxu0 0
    %307 = vmatprep.subr.bf16.mxu0 0
    %308 = vmatpush1.bf16.msra.mxu0 0
    %309 = vmatprep.subr.bf16.mxu0 0
    %310 = vmatpush1.bf16.msra.mxu0 0
    %311 = vmatprep.subr.bf16.mxu0 0
    %312 = vmatpush1.bf16.msra.mxu0 0
    %313 = vmatprep.subr.bf16.mxu0 0
    %314 = vmatpush1.bf16.msra.mxu0 0
    %315 = vmatprep.subr.bf16.mxu0 0
    %316 = vmatpush1.bf16.msra.mxu0 0
    %317 = vmatprep.subr.bf16.mxu0 0
    %318 = vmatpush1.bf16.msra.mxu0 0
    %319 = vmatprep.subr.bf16.mxu0 0
    %320 = vmatpush1.bf16.msra.mxu0 0
    %321 = vmatprep.subr.bf16.mxu0 0
    %322 = vmatpush1.bf16.msra.mxu0 0
    %323 = vmatprep.subr.bf16.mxu0 0
    %324 = vmatpush1.bf16.msra.mxu0 0
    %325 = vmatprep.subr.bf16.mxu0 0
    %326 = vmatpush1.bf16.msra.mxu0 0
    %327 = vmatprep.subr.bf16.mxu0 0
    %328 = vmatpush1.bf16.msra.mxu0 0
    %329 = vmatprep.mubr.bf16.mxu0 0
    %330 = vmatmul.mubr.bf16.gmra.mrb[0].mxu0 %v213
    %v331 = vpop.f32.mrb[0].mxu0
    %v332 = vadd.f32 0.0, %v331
    %v333 = vpop.f32.mrb[0].mxu0
    %v334 = vadd.f32 0.0, %v333
    %v335 = vpop.f32.mrb[0].mxu0
    %v336 = vadd.f32 0.0, %v335
    %v337 = vpop.f32.mrb[0].mxu0
    %v338 = vadd.f32 0.0, %v337
    %339 = vmatprep.mubr.bf16.mxu0 0
    %340 = vmatmul.mubr.bf16.gmra.mrb[0].mxu0 %v216
    %v341 = vpop.f32.mrb[0].mxu0
    %v342 = vadd.f32 0.0, %v341
    %v343 = vpop.f32.mrb[0].mxu0
    %v344 = vadd.f32 0.0, %v343
    %v345 = vpop.f32.mrb[0].mxu0
    %v346 = vadd.f32 0.0, %v345
    %v347 = vpop.f32.mrb[0].mxu0
    %v348 = vadd.f32 0.0, %v347
    %349 = vmatprep.mubr.bf16.mxu0 0
    %350 = vmatmul.mubr.bf16.gmra.mrb[0].mxu0 %v219
    %v351 = vpop.f32.mrb[0].mxu0
    %v352 = vadd.f32 0.0, %v351
    %v353 = vpop.f32.mrb[0].mxu0
    %v354 = vadd.f32 0.0, %v353
    %v355 = vpop.f32.mrb[0].mxu0
    %v356 = vadd.f32 0.0, %v355
    %v357 = vpop.f32.mrb[0].mxu0
    %v358 = vadd.f32 0.0, %v357
    %359 = vmatprep.mubr.bf16.mxu0 0
    %360 = vmatmul.mubr.bf16.gmra.mrb[0].mxu0 %v222
    %v361 = vpop.f32.mrb[0].mxu0
    %v362 = vadd.f32 0.0, %v361
    %v363 = vpop.f32.mrb[0].mxu0
    %v364 = vadd.f32 0.0, %v363
    %v365 = vpop.f32.mrb[0].mxu0
    %v366 = vadd.f32 0.0, %v365
    %v367 = vpop.f32.mrb[0].mxu0
    %v368 = vadd.f32 0.0, %v367
    %369 = vdwg.mxu0
    %v370 = vstv %s177
    %v371 = vmul.f32 %v259, %v370
    %v372 = vmul.f32 %v261, %v370
    %v373 = vmul.f32 %v332, %v370
    %v374 = vmul.f32 %v334, %v370
    %v375 = vmul.f32 %v263, %v370
    %v376 = vmul.f32 %v265, %v370
    %v377 = vmul.f32 %v336, %v370
    %v378 = vmul.f32 %v338, %v370
    %v379 = vmul.f32 %v269, %v370
    %v380 = vmul.f32 %v271, %v370
    %v381 = vmul.f32 %v342, %v370
    %v382 = vmul.f32 %v344, %v370
    %v383 = vmul.f32 %v273, %v370
    %v384 = vmul.f32 %v275, %v370
    %v385 = vmul.f32 %v346, %v370
    %v386 = vmul.f32 %v348, %v370
    %v387 = vmul.f32 %v279, %v370
    %v388 = vmul.f32 %v281, %v370
    %v389 = vmul.f32 %v352, %v370
    %v390 = vmul.f32 %v354, %v370
    %v391 = vmul.f32 %v283, %v370
    %v392 = vmul.f32 %v285, %v370
    %v393 = vmul.f32 %v356, %v370
    %v394 = vmul.f32 %v358, %v370
    %v395 = vmul.f32 %v289, %v370
    %v396 = vmul.f32 %v291, %v370
    %v397 = vmul.f32 %v362, %v370
    %v398 = vmul.f32 %v364, %v370
    %v399 = vmul.f32 %v293, %v370
    %v400 = vmul.f32 %v295, %v370
    %v401 = vmul.f32 %v366, %v370
    %v402 = vmul.f32 %v368, %v370
    %v403 = vld [vmem:[%s4] sm:$0xf]
    %v405 = vlaneseq
    %v406 = vshrl.u32 %v405, 7
    %v407 = vsub.s32 0, %v406
    %v408 = vrot.slane %v403, %v407
    %v409 = vlaneseq
    %v410 = vshrl.u32 %v409, 7
    %v411 = vsub.s32 1, %v410
    %v412 = vrot.slane %v403, %v411
    %v413 = vlaneseq
    %v414 = vshrl.u32 %v413, 7
    %v415 = vsub.s32 2, %v414
    %v416 = vrot.slane %v403, %v415
    %v417 = vlaneseq
    %v418 = vshrl.u32 %v417, 7
    %v419 = vsub.s32 3, %v418
    %v420 = vrot.slane %v403, %v419
    %v425 = vadd.f32 %v371, %v408
    %v426 = vadd.f32 %v372, %v412
    %v427 = vadd.f32 %v373, %v416
    %v428 = vadd.f32 %v374, %v420
    %v429 = vadd.f32 %v375, %v408
    %v430 = vadd.f32 %v376, %v412
    %v431 = vadd.f32 %v377, %v416
    %v432 = vadd.f32 %v378, %v420
    %v433 = vadd.f32 %v379, %v408
    %v434 = vadd.f32 %v380, %v412
    %v435 = vadd.f32 %v381, %v416
    %v436 = vadd.f32 %v382, %v420
    %v437 = vadd.f32 %v383, %v408
    %v438 = vadd.f32 %v384, %v412
    %v439 = vadd.f32 %v385, %v416
    %v440 = vadd.f32 %v386, %v420
    %v441 = vadd.f32 %v387, %v408
    %v442 = vadd.f32 %v388, %v412
    %v443 = vadd.f32 %v389, %v416
    %v444 = vadd.f32 %v390, %v420
    %v445 = vadd.f32 %v391, %v408
    %v446 = vadd.f32 %v392, %v412
    %v447 = vadd.f32 %v393, %v416
    %v448 = vadd.f32 %v394, %v420
    %v449 = vadd.f32 %v395, %v408
    %v450 = vadd.f32 %v396, %v412
    %v451 = vadd.f32 %v397, %v416
    %v452 = vadd.f32 %v398, %v420
    %v453 = vadd.f32 %v399, %v408
    %v454 = vadd.f32 %v400, %v412
    %v455 = vadd.f32 %v401, %v416
    %v456 = vadd.f32 %v402, %v420
    %457 = vst [vmem:[#allocation6] sm:$0xff] %v425
    %458 = vst [vmem:[#allocation6 + $0x8] sm:$0xff] %v426
    %459 = vst [vmem:[#allocation6 + $0x10] sm:$0xff] %v427
    %460 = vst [vmem:[#allocation6 + $0x18] sm:$0xff] %v428
    %461 = vst [vmem:[#allocation6 + $0x20] sm:$0xff] %v429
    %462 = vst [vmem:[#allocation6 + $0x28] sm:$0xff] %v430
    %463 = vst [vmem:[#allocation6 + $0x30] sm:$0xff] %v431
    %464 = vst [vmem:[#allocation6 + $0x38] sm:$0xff] %v432
    %465 = vst [vmem:[#allocation6 + $0x40] sm:$0xff] %v433
    %466 = vst [vmem:[#allocation6 + $0x48] sm:$0xff] %v434
    %467 = vst [vmem:[#allocation6 + $0x50] sm:$0xff] %v435
    %468 = vst [vmem:[#allocation6 + $0x58] sm:$0xff] %v436
    %469 = vst [vmem:[#allocation6 + $0x60] sm:$0xff] %v437
    %470 = vst [vmem:[#allocation6 + $0x68] sm:$0xff] %v438
    %471 = vst [vmem:[#allocation6 + $0x70] sm:$0xff] %v439
    %472 = vst [vmem:[#allocation6 + $0x78] sm:$0xff] %v440
    %473 = vst [vmem:[#allocation6 + $0x80] sm:$0xff] %v441
    %474 = vst [vmem:[#allocation6 + $0x88] sm:$0xff] %v442
    %475 = vst [vmem:[#allocation6 + $0x90] sm:$0xff] %v443
    %476 = vst [vmem:[#allocation6 + $0x98] sm:$0xff] %v444
    %477 = vst [vmem:[#allocation6 + $0xa0] sm:$0xff] %v445
    %478 = vst [vmem:[#allocation6 + $0xa8] sm:$0xff] %v446
    %479 = vst [vmem:[#allocation6 + $0xb0] sm:$0xff] %v447
    %480 = vst [vmem:[#allocation6 + $0xb8] sm:$0xff] %v448
    %481 = vst [vmem:[#allocation6 + $0xc0] sm:$0xff] %v449
    %482 = vst [vmem:[#allocation6 + $0xc8] sm:$0xff] %v450
    %483 = vst [vmem:[#allocation6 + $0xd0] sm:$0xff] %v451
    %484 = vst [vmem:[#allocation6 + $0xd8] sm:$0xff] %v452
    %485 = vst [vmem:[#allocation6 + $0xe0] sm:$0xff] %v453
    %486 = vst [vmem:[#allocation6 + $0xe8] sm:$0xff] %v454
    %487 = vst [vmem:[#allocation6 + $0xf0] sm:$0xff] %v455
    %488 = vst [vmem:[#allocation6 + $0xf8] sm:$0xff] %v456
    %v489 = vld [vmem:[#allocation5] sm:$0xff]
    %v490 = vld [vmem:[#allocation5 + $0x8] sm:$0xff]
    %v491 = vld [vmem:[#allocation5 + $0x10] sm:$0xff]
    %v492 = vld [vmem:[#allocation5 + $0x18] sm:$0xff]
    %v493 = vld [vmem:[#allocation5 + $0x20] sm:$0xff]
    %v494 = vld [vmem:[#allocation5 + $0x28] sm:$0xff]
    %v495 = vld [vmem:[#allocation5 + $0x30] sm:$0xff]
    %v496 = vld [vmem:[#allocation5 + $0x38] sm:$0xff]
    %v497 = vld [vmem:[#allocation5 + $0x40] sm:$0xff]
    %v498 = vld [vmem:[#allocation5 + $0x48] sm:$0xff]
    %v499 = vld [vmem:[#allocation5 + $0x50] sm:$0xff]
    %v500 = vld [vmem:[#allocation5 + $0x58] sm:$0xff]
    %v501 = vld [vmem:[#allocation5 + $0x60] sm:$0xff]
    %v502 = vld [vmem:[#allocation5 + $0x68] sm:$0xff]
    %v503 = vld [vmem:[#allocation5 + $0x70] sm:$0xff]
    %v504 = vld [vmem:[#allocation5 + $0x78] sm:$0xff]
    %v505 = vld [vmem:[#allocation5 + $0x80] sm:$0xff]
    %v506 = vld [vmem:[#allocation5 + $0x88] sm:$0xff]
    %v507 = vld [vmem:[#allocation5 + $0x90] sm:$0xff]
    %v508 = vld [vmem:[#allocation5 + $0x98] sm:$0xff]
    %v509 = vld [vmem:[#allocation5 + $0xa0] sm:$0xff]
    %v510 = vld [vmem:[#allocation5 + $0xa8] sm:$0xff]
    %v511 = vld [vmem:[#allocation5 + $0xb0] sm:$0xff]
    %v512 = vld [vmem:[#allocation5 + $0xb8] sm:$0xff]
    %v513 = vld [vmem:[#allocation5 + $0xc0] sm:$0xff]
    %v514 = vld [vmem:[#allocation5 + $0xc8] sm:$0xff]
    %v515 = vld [vmem:[#allocation5 + $0xd0] sm:$0xff]
    %v516 = vld [vmem:[#allocation5 + $0xd8] sm:$0xff]
    %v517 = vld [vmem:[#allocation5 + $0xe0] sm:$0xff]
    %v518 = vld [vmem:[#allocation5 + $0xe8] sm:$0xff]
    %v519 = vld [vmem:[#allocation5 + $0xf0] sm:$0xff]
    %v520 = vld [vmem:[#allocation5 + $0xf8] sm:$0xff]
    %v521 = vld [vmem:[#allocation2] sm:$0xff]
    %v522 = vld [vmem:[#allocation3] sm:$0xff]
    %v523 = vpack.c.bf16 %v521, %v521
    %524 = vmatprep.subr.bf16.mxu0 %v490
    %525 = vmatpush1.bf16.msra.mxu0 %v489
    %526 = vmatprep.subr.bf16.mxu0 %v494
    %527 = vmatpush1.bf16.msra.mxu0 %v493
    %528 = vmatprep.subr.bf16.mxu0 %v498
    %529 = vmatpush1.bf16.msra.mxu0 %v497
    %530 = vmatprep.subr.bf16.mxu0 %v502
    %531 = vmatpush1.bf16.msra.mxu0 %v501
    %532 = vmatprep.subr.bf16.mxu0 %v506
    %533 = vmatpush1.bf16.msra.mxu0 %v505
    %534 = vmatprep.subr.bf16.mxu0 %v510
    %535 = vmatpush1.bf16.msra.mxu0 %v509
    %536 = vmatprep.subr.bf16.mxu0 %v514
    %537 = vmatpush1.bf16.msra.mxu0 %v513
    %538 = vmatprep.subr.bf16.mxu0 %v518
    %539 = vmatpush1.bf16.msra.mxu0 %v517
    %540 = vmatprep.subr.bf16.mxu0 0
    %541 = vmatpush1.bf16.msra.mxu0 0
    %542 = vmatprep.subr.bf16.mxu0 0
    %543 = vmatpush1.bf16.msra.mxu0 0
    %544 = vmatprep.subr.bf16.mxu0 0
    %545 = vmatpush1.bf16.msra.mxu0 0
    %546 = vmatprep.subr.bf16.mxu0 0
    %547 = vmatpush1.bf16.msra.mxu0 0
    %548 = vmatprep.subr.bf16.mxu0 0
    %549 = vmatpush1.bf16.msra.mxu0 0
    %550 = vmatprep.subr.bf16.mxu0 0
    %551 = vmatpush1.bf16.msra.mxu0 0
    %552 = vmatprep.subr.bf16.mxu0 0
    %553 = vmatpush1.bf16.msra.mxu0 0
    %554 = vmatprep.subr.bf16.mxu0 0
    %555 = vmatpush1.bf16.msra.mxu0 0
    %556 = vmatprep.mubr.bf16.mxu0 0
    %557 = vmatmul.mubr.bf16.gmra.mrb[0].mxu0 %v523
    %v558 = vpop.f32.mrb[0].mxu0
    %v559 = vadd.f32 0.0, %v558
    %v560 = vpop.f32.mrb[0].mxu0
    %v561 = vadd.f32 0.0, %v560
    %v562 = vpop.f32.mrb[0].mxu0
    %v563 = vpop.f32.mrb[0].mxu0
    %564 = vdwg.mxu0
    %565 = vmatprep.subr.bf16.mxu0 %v492
    %566 = vmatpush1.bf16.msra.mxu0 %v491
    %567 = vmatprep.subr.bf16.mxu0 %v496
    %568 = vmatpush1.bf16.msra.mxu0 %v495
    %569 = vmatprep.subr.bf16.mxu0 %v500
    %570 = vmatpush1.bf16.msra.mxu0 %v499
    %571 = vmatprep.subr.bf16.mxu0 %v504
    %572 = vmatpush1.bf16.msra.mxu0 %v503
    %573 = vmatprep.subr.bf16.mxu0 %v508
    %574 = vmatpush1.bf16.msra.mxu0 %v507
    %575 = vmatprep.subr.bf16.mxu0 %v512
    %576 = vmatpush1.bf16.msra.mxu0 %v511
    %577 = vmatprep.subr.bf16.mxu0 %v516
    %578 = vmatpush1.bf16.msra.mxu0 %v515
    %579 = vmatprep.subr.bf16.mxu0 %v520
    %580 = vmatpush1.bf16.msra.mxu0 %v519
    %581 = vmatprep.subr.bf16.mxu0 0
    %582 = vmatpush1.bf16.msra.mxu0 0
    %583 = vmatprep.subr.bf16.mxu0 0
    %584 = vmatpush1.bf16.msra.mxu0 0
    %585 = vmatprep.subr.bf16.mxu0 0
    %586 = vmatpush1.bf16.msra.mxu0 0
    %587 = vmatprep.subr.bf16.mxu0 0
    %588 = vmatpush1.bf16.msra.mxu0 0
    %589 = vmatprep.subr.bf16.mxu0 0
    %590 = vmatpush1.bf16.msra.mxu0 0
    %591 = vmatprep.subr.bf16.mxu0 0
    %592 = vmatpush1.bf16.msra.mxu0 0
    %593 = vmatprep.subr.bf16.mxu0 0
    %594 = vmatpush1.bf16.msra.mxu0 0
    %595 = vmatprep.subr.bf16.mxu0 0
    %596 = vmatpush1.bf16.msra.mxu0 0
    %597 = vmatprep.mubr.bf16.mxu0 0
    %598 = vmatmul.mubr.bf16.gmra.mrb[0].mxu0 %v523
    %v599 = vpop.f32.mrb[0].mxu0
    %v600 = vadd.f32 0.0, %v599
    %v601 = vpop.f32.mrb[0].mxu0
    %v602 = vadd.f32 0.0, %v601
    %v603 = vpop.f32.mrb[0].mxu0
    %v604 = vpop.f32.mrb[0].mxu0
    %605 = vdwg.mxu0
    %v606 = vstv %s178
    %v607 = vmul.f32 %v559, %v606
    %v608 = vmul.f32 %v561, %v606
    %v609 = vmul.f32 %v600, %v606
    %v610 = vmul.f32 %v602, %v606
    %v611 = vld [vmem:[#allocation6] sm:$0xff]
    %v612 = vld [vmem:[#allocation6 + $0x8] sm:$0xff]
    %v613 = vld [vmem:[#allocation6 + $0x10] sm:$0xff]
    %v614 = vld [vmem:[#allocation6 + $0x18] sm:$0xff]
    %v615 = vadd.f32 %v607, %v611
    %v616 = vadd.f32 %v608, %v612
    %v617 = vadd.f32 %v609, %v613
    %v618 = vadd.f32 %v610, %v614
    %v619 = vxor.u32 %v615, 2147483648
    %v620 = vmul.f32 %v619, 1.442695
    %v621 = vpow.pop %v620
    %v622 = vadd.f32 %v621, 1.0
    %v623 = vrcp.pop %v622
    %v624 = vmul.f32 1.0, %v623
    %v625 = vxor.u32 %v616, 2147483648
    %v626 = vmul.f32 %v625, 1.442695
    %v627 = vpow.pop %v626
    %v628 = vadd.f32 %v627, 1.0
    %v629 = vrcp.pop %v628
    %v630 = vmul.f32 1.0, %v629
    %v631 = vtanh.pop %v617
    %v632 = vxor.u32 %v618, 2147483648
    %v633 = vmul.f32 %v632, 1.442695
    %v634 = vpow.pop %v633
    %v635 = vadd.f32 %v634, 1.0
    %v636 = vrcp.pop %v635
    %v637 = vmul.f32 1.0, %v636
    %v638 = vmul.f32 %v630, %v522
    %v639 = vmul.f32 %v624, %v631
    %v640 = vadd.f32 %v638, %v639
    %v641 = vtanh.pop %v640
    %v642 = vmul.f32 %v637, %v641
    %v643 = vpack.c.bf16 %v642, %v642
    %644 = vst [vmem:[#allocation12] sm:$0xf] %v643
    %s645 = smul.u32 0, 8
    %p646 = scmp.eq.s32.totalorder %s645, 7
    // Predicated region
    $region42: #{tpu_custom_call.1} parent=1 // pred_check
      %p647 = pneg %p646
    $region43: #{tpu_custom_call.1} parent=1 // pred_check_branch
      %649 = sbr.rel (%p647) target = $region45
    $region44: #{tpu_custom_call.1} parent=1 // pred_region
      %650 = vst [vmem:[#allocation13] sm:$0xff] %v642
      %651 = vst [vmem:[#allocation15] sm:$0xff] %v640
    $region45: #{tpu_custom_call.1} parent=1 // pred_fallthru
      _
    %652 = vmatprep.subr.bf16.mxu0 %v490
    %653 = vmatpush1.bf16.msra.mxu0 %v489
    %654 = vmatprep.subr.bf16.mxu0 %v494
    %655 = vmatpush1.bf16.msra.mxu0 %v493
    %656 = vmatprep.subr.bf16.mxu0 %v498
    %657 = vmatpush1.bf16.msra.mxu0 %v497
    %658 = vmatprep.subr.bf16.mxu0 %v502
    %659 = vmatpush1.bf16.msra.mxu0 %v501
    %660 = vmatprep.subr.bf16.mxu0 %v506
    %661 = vmatpush1.bf16.msra.mxu0 %v505
    %662 = vmatprep.subr.bf16.mxu0 %v510
    %663 = vmatpush1.bf16.msra.mxu0 %v509
    %664 = vmatprep.subr.bf16.mxu0 %v514
    %665 = vmatpush1.bf16.msra.mxu0 %v513
    %666 = vmatprep.subr.bf16.mxu0 %v518
    %667 = vmatpush1.bf16.msra.mxu0 %v517
    %668 = vmatprep.subr.bf16.mxu0 0
    %669 = vmatpush1.bf16.msra.mxu0 0
    %670 = vmatprep.subr.bf16.mxu0 0
    %671 = vmatpush1.bf16.msra.mxu0 0
    %672 = vmatprep.subr.bf16.mxu0 0
    %673 = vmatpush1.bf16.msra.mxu0 0
    %674 = vmatprep.subr.bf16.mxu0 0
    %675 = vmatpush1.bf16.msra.mxu0 0
    %676 = vmatprep.subr.bf16.mxu0 0
    %677 = vmatpush1.bf16.msra.mxu0 0
    %678 = vmatprep.subr.bf16.mxu0 0
    %679 = vmatpush1.bf16.msra.mxu0 0
    %680 = vmatprep.subr.bf16.mxu0 0
    %681 = vmatpush1.bf16.msra.mxu0 0
    %682 = vmatprep.subr.bf16.mxu0 0
    %683 = vmatpush1.bf16.msra.mxu0 0
    %684 = vmatprep.mubr.bf16.mxu0 0
    %685 = vmatmul.mubr.bf16.gmra.mrb[0].mxu0 %v643
    %v686 = vpop.f32.mrb[0].mxu0
    %v687 = vadd.f32 0.0, %v686
    %v688 = vpop.f32.mrb[0].mxu0
    %v689 = vadd.f32 0.0, %v688
    %v690 = vpop.f32.mrb[0].mxu0
    %v691 = vpop.f32.mrb[0].mxu0
    %692 = vdwg.mxu0
    %693 = vmatprep.subr.bf16.mxu0 %v492
    %694 = vmatpush1.bf16.msra.mxu0 %v491
    %695 = vmatprep.subr.bf16.mxu0 %v496
    %696 = vmatpush1.bf16.msra.mxu0 %v495
    %697 = vmatprep.subr.bf16.mxu0 %v500
    %698 = vmatpush1.bf16.msra.mxu0 %v499
    %699 = vmatprep.subr.bf16.mxu0 %v504
    %700 = vmatpush1.bf16.msra.mxu0 %v503
    %701 = vmatprep.subr.bf16.mxu0 %v508
    %702 = vmatpush1.bf16.msra.mxu0 %v507
    %703 = vmatprep.subr.bf16.mxu0 %v512
    %704 = vmatpush1.bf16.msra.mxu0 %v511
    %705 = vmatprep.subr.bf16.mxu0 %v516
    %706 = vmatpush1.bf16.msra.mxu0 %v515
    %707 = vmatprep.subr.bf16.mxu0 %v520
    %708 = vmatpush1.bf16.msra.mxu0 %v519
    %709 = vmatprep.subr.bf16.mxu0 0
    %710 = vmatpush1.bf16.msra.mxu0 0
    %711 = vmatprep.subr.bf16.mxu0 0
    %712 = vmatpush1.bf16.msra.mxu0 0
    %713 = vmatprep.subr.bf16.mxu0 0
    %714 = vmatpush1.bf16.msra.mxu0 0
    %715 = vmatprep.subr.bf16.mxu0 0
    %716 = vmatpush1.bf16.msra.mxu0 0
    %717 = vmatprep.subr.bf16.mxu0 0
    %718 = vmatpush1.bf16.msra.mxu0 0
    %719 = vmatprep.subr.bf16.mxu0 0
    %720 = vmatpush1.bf16.msra.mxu0 0
    %721 = vmatprep.subr.bf16.mxu0 0
    %722 = vmatpush1.bf16.msra.mxu0 0
    %723 = vmatprep.subr.bf16.mxu0 0
    %724 = vmatpush1.bf16.msra.mxu0 0
    %725 = vmatprep.mubr.bf16.mxu0 0
    %726 = vmatmul.mubr.bf16.gmra.mrb[0].mxu0 %v643
    %v727 = vpop.f32.mrb[0].mxu0
    %v728 = vadd.f32 0.0, %v727
    %v729 = vpop.f32.mrb[0].mxu0
    %v730 = vadd.f32 0.0, %v729
    %v731 = vpop.f32.mrb[0].mxu0
    %v732 = vpop.f32.mrb[0].mxu0
    %733 = vdwg.mxu0
    %v734 = vmul.f32 %v687, %v606
    %v735 = vmul.f32 %v689, %v606
    %v736 = vmul.f32 %v728, %v606
    %v737 = vmul.f32 %v730, %v606
    %v738 = vld [vmem:[#allocation6 + $0x20] sm:$0xff]
    %v739 = vld [vmem:[#allocation6 + $0x28] sm:$0xff]
    %v740 = vld [vmem:[#allocation6 + $0x30] sm:$0xff]
    %v741 = vld [vmem:[#allocation6 + $0x38] sm:$0xff]
    %v742 = vadd.f32 %v734, %v738
    %v743 = vadd.f32 %v735, %v739
    %v744 = vadd.f32 %v736, %v740
    %v745 = vadd.f32 %v737, %v741
    %v746 = vxor.u32 %v742, 2147483648
    %v747 = vmul.f32 %v746, 1.442695
    %v748 = vpow.pop %v747
    %v749 = vadd.f32 %v748, 1.0
    %v750 = vrcp.pop %v749
    %v751 = vmul.f32 1.0, %v750
    %v752 = vxor.u32 %v743, 2147483648
    %v753 = vmul.f32 %v752, 1.442695
    %v754 = vpow.pop %v753
    %v755 = vadd.f32 %v754, 1.0
    %v756 = vrcp.pop %v755
    %v757 = vmul.f32 1.0, %v756
    %v758 = vtanh.pop %v744
    %v759 = vxor.u32 %v745, 2147483648
    %v760 = vmul.f32 %v759, 1.442695
    %v761 = vpow.pop %v760
    %v762 = vadd.f32 %v761, 1.0
    %v763 = vrcp.pop %v762
    %v764 = vmul.f32 1.0, %v763
    %v765 = vmul.f32 %v757, %v640
    %v766 = vmul.f32 %v751, %v758
    %v767 = vadd.f32 %v765, %v766
    %v768 = vtanh.pop %v767
    %v769 = vmul.f32 %v764, %v768
    %v770 = vpack.c.bf16 %v769, %v769
    %s771 = scalar_lea.vmem [#allocation12], 4
    %772 = vst [vmem:[%s771] sm:$0xf] %v770
    %s773 = sadd.s32 %s645, 1
    %p774 = scmp.eq.s32.totalorder %s773, 7
    // Predicated region
    $region46: #{tpu_custom_call.1} parent=1 // pred_check
      %p775 = pneg %p774
    $region47: #{tpu_custom_call.1} parent=1 // pred_check_branch
      %777 = sbr.rel (%p775) target = $region49
    $region48: #{tpu_custom_call.1} parent=1 // pred_region
      %778 = vst [vmem:[#allocation13] sm:$0xff] %v769
      %779 = vst [vmem:[#allocation15] sm:$0xff] %v767
    $region49: #{tpu_custom_call.1} parent=1 // pred_fallthru
      _
    %780 = vmatprep.subr.bf16.mxu0 %v490
    %781 = vmatpush1.bf16.msra.mxu0 %v489
    %782 = vmatprep.subr.bf16.mxu0 %v494
    %783 = vmatpush1.bf16.msra.mxu0 %v493
    %784 = vmatprep.subr.bf16.mxu0 %v498
    %785 = vmatpush1.bf16.msra.mxu0 %v497
    %786 = vmatprep.subr.bf16.mxu0 %v502
    %787 = vmatpush1.bf16.msra.mxu0 %v501
    %788 = vmatprep.subr.bf16.mxu0 %v506
    %789 = vmatpush1.bf16.msra.mxu0 %v505
    %790 = vmatprep.subr.bf16.mxu0 %v510
    %791 = vmatpush1.bf16.msra.mxu0 %v509
    %792 = vmatprep.subr.bf16.mxu0 %v514
    %793 = vmatpush1.bf16.msra.mxu0 %v513
    %794 = vmatprep.subr.bf16.mxu0 %v518
    %795 = vmatpush1.bf16.msra.mxu0 %v517
    %796 = vmatprep.subr.bf16.mxu0 0
    %797 = vmatpush1.bf16.msra.mxu0 0
    %798 = vmatprep.subr.bf16.mxu0 0
    %799 = vmatpush1.bf16.msra.mxu0 0
    %800 = vmatprep.subr.bf16.mxu0 0
    %801 = vmatpush1.bf16.msra.mxu0 0
    %802 = vmatprep.subr.bf16.mxu0 0
    %803 = vmatpush1.bf16.msra.mxu0 0
    %804 = vmatprep.subr.bf16.mxu0 0
    %805 = vmatpush1.bf16.msra.mxu0 0
    %806 = vmatprep.subr.bf16.mxu0 0
    %807 = vmatpush1.bf16.msra.mxu0 0
    %808 = vmatprep.subr.bf16.mxu0 0
    %809 = vmatpush1.bf16.msra.mxu0 0
    %810 = vmatprep.subr.bf16.mxu0 0
    %811 = vmatpush1.bf16.msra.mxu0 0
    %812 = vmatprep.mubr.bf16.mxu0 0
    %813 = vmatmul.mubr.bf16.gmra.mrb[0].mxu0 %v770
    %v814 = vpop.f32.mrb[0].mxu0
    %v815 = vadd.f32 0.0, %v814
    %v816 = vpop.f32.mrb[0].mxu0
    %v817 = vadd.f32 0.0, %v816
    %v818 = vpop.f32.mrb[0].mxu0
    %v819 = vpop.f32.mrb[0].mxu0
    %820 = vdwg.mxu0
    %821 = vmatprep.subr.bf16.mxu0 %v492
    %822 = vmatpush1.bf16.msra.mxu0 %v491
    %823 = vmatprep.subr.bf16.mxu0 %v496
    %824 = vmatpush1.bf16.msra.mxu0 %v495
    %825 = vmatprep.subr.bf16.mxu0 %v500
    %826 = vmatpush1.bf16.msra.mxu0 %v499
    %827 = vmatprep.subr.bf16.mxu0 %v504
    %828 = vmatpush1.bf16.msra.mxu0 %v503
    %829 = vmatprep.subr.bf16.mxu0 %v508
    %830 = vmatpush1.bf16.msra.mxu0 %v507
    %831 = vmatprep.subr.bf16.mxu0 %v512
    %832 = vmatpush1.bf16.msra.mxu0 %v511
    %833 = vmatprep.subr.bf16.mxu0 %v516
    %834 = vmatpush1.bf16.msra.mxu0 %v515
    %835 = vmatprep.subr.bf16.mxu0 %v520
    %836 = vmatpush1.bf16.msra.mxu0 %v519
    %837 = vmatprep.subr.bf16.mxu0 0
    %838 = vmatpush1.bf16.msra.mxu0 0
    %839 = vmatprep.subr.bf16.mxu0 0
    %840 = vmatpush1.bf16.msra.mxu0 0
    %841 = vmatprep.subr.bf16.mxu0 0
    %842 = vmatpush1.bf16.msra.mxu0 0
    %843 = vmatprep.subr.bf16.mxu0 0
    %844 = vmatpush1.bf16.msra.mxu0 0
    %845 = vmatprep.subr.bf16.mxu0 0
    %846 = vmatpush1.bf16.msra.mxu0 0
    %847 = vmatprep.subr.bf16.mxu0 0
    %848 = vmatpush1.bf16.msra.mxu0 0
    %849 = vmatprep.subr.bf16.mxu0 0
    %850 = vmatpush1.bf16.msra.mxu0 0
    %851 = vmatprep.subr.bf16.mxu0 0
    %852 = vmatpush1.bf16.msra.mxu0 0
    %853 = vmatprep.mubr.bf16.mxu0 0
    %854 = vmatmul.mubr.bf16.gmra.mrb[0].mxu0 %v770
    %v855 = vpop.f32.mrb[0].mxu0
    %v856 = vadd.f32 0.0, %v855
    %v857 = vpop.f32.mrb[0].mxu0
    %v858 = vadd.f32 0.0, %v857
    %v859 = vpop.f32.mrb[0].mxu0
    %v860 = vpop.f32.mrb[0].mxu0
    %861 = vdwg.mxu0
    %v862 = vmul.f32 %v815, %v606
    %v863 = vmul.f32 %v817, %v606
    %v864 = vmul.f32 %v856, %v606
    %v865 = vmul.f32 %v858, %v606
    %v866 = vld [vmem:[#allocation6 + $0x40] sm:$0xff]
    %v867 = vld [vmem:[#allocation6 + $0x48] sm:$0xff]
    %v868 = vld [vmem:[#allocation6 + $0x50] sm:$0xff]
    %v869 = vld [vmem:[#allocation6 + $0x58] sm:$0xff]
    %v870 = vadd.f32 %v862, %v866
    %v871 = vadd.f32 %v863, %v867
    %v872 = vadd.f32 %v864, %v868
    %v873 = vadd.f32 %v865, %v869
    %v874 = vxor.u32 %v870, 2147483648
    %v875 = vmul.f32 %v874, 1.442695
    %v876 = vpow.pop %v875
    %v877 = vadd.f32 %v876, 1.0
    %v878 = vrcp.pop %v877
    %v879 = vmul.f32 1.0, %v878
    %v880 = vxor.u32 %v871, 2147483648
    %v881 = vmul.f32 %v880, 1.442695
    %v882 = vpow.pop %v881
    %v883 = vadd.f32 %v882, 1.0
    %v884 = vrcp.pop %v883
    %v885 = vmul.f32 1.0, %v884
    %v886 = vtanh.pop %v872
    %v887 = vxor.u32 %v873, 2147483648
    %v888 = vmul.f32 %v887, 1.442695
    %v889 = vpow.pop %v888
    %v890 = vadd.f32 %v889, 1.0
    %v891 = vrcp.pop %v890
    %v892 = vmul.f32 1.0, %v891
    %v893 = vmul.f32 %v885, %v767
    %v894 = vmul.f32 %v879, %v886
    %v895 = vadd.f32 %v893, %v894
    %v896 = vtanh.pop %v895
    %v897 = vmul.f32 %v892, %v896
    %v898 = vpack.c.bf16 %v897, %v897
    %s899 = scalar_lea.vmem [#allocation12], 8
    %900 = vst [vmem:[%s899] sm:$0xf] %v898
    %s901 = sadd.s32 %s645, 2
    %p902 = scmp.eq.s32.totalorder %s901, 7
    // Predicated region
    $region50: #{tpu_custom_call.1} parent=1 // pred_check
      %p903 = pneg %p902
    $region51: #{tpu_custom_call.1} parent=1 // pred_check_branch
      %905 = sbr.rel (%p903) target = $region53
    $region52: #{tpu_custom_call.1} parent=1 // pred_region
      %906 = vst [vmem:[#allocation13] sm:$0xff] %v897
      %907 = vst [vmem:[#allocation15] sm:$0xff] %v895
    $region53: #{tpu_custom_call.1} parent=1 // pred_fallthru
      _
    %908 = vmatprep.subr.bf16.mxu0 %v490
    %909 = vmatpush1.bf16.msra.mxu0 %v489
    %910 = vmatprep.subr.bf16.mxu0 %v494
    %911 = vmatpush1.bf16.msra.mxu0 %v493
    %912 = vmatprep.subr.bf16.mxu0 %v498
    %913 = vmatpush1.bf16.msra.mxu0 %v497
    %914 = vmatprep.subr.bf16.mxu0 %v502
    %915 = vmatpush1.bf16.msra.mxu0 %v501
    %916 = vmatprep.subr.bf16.mxu0 %v506
    %917 = vmatpush1.bf16.msra.mxu0 %v505
    %918 = vmatprep.subr.bf16.mxu0 %v510
    %919 = vmatpush1.bf16.msra.mxu0 %v509
    %920 = vmatprep.subr.bf16.mxu0 %v514
    %921 = vmatpush1.bf16.msra.mxu0 %v513
    %922 = vmatprep.subr.bf16.mxu0 %v518
    %923 = vmatpush1.bf16.msra.mxu0 %v517
    %924 = vmatprep.subr.bf16.mxu0 0
    %925 = vmatpush1.bf16.msra.mxu0 0
    %926 = vmatprep.subr.bf16.mxu0 0
    %927 = vmatpush1.bf16.msra.mxu0 0
    %928 = vmatprep.subr.bf16.mxu0 0
    %929 = vmatpush1.bf16.msra.mxu0 0
    %930 = vmatprep.subr.bf16.mxu0 0
    %931 = vmatpush1.bf16.msra.mxu0 0
    %932 = vmatprep.subr.bf16.mxu0 0
    %933 = vmatpush1.bf16.msra.mxu0 0
    %934 = vmatprep.subr.bf16.mxu0 0
    %935 = vmatpush1.bf16.msra.mxu0 0
    %936 = vmatprep.subr.bf16.mxu0 0
    %937 = vmatpush1.bf16.msra.mxu0 0
    %938 = vmatprep.subr.bf16.mxu0 0
    %939 = vmatpush1.bf16.msra.mxu0 0
    %940 = vmatprep.mubr.bf16.mxu0 0
    %941 = vmatmul.mubr.bf16.gmra.mrb[0].mxu0 %v898
    %v942 = vpop.f32.mrb[0].mxu0
    %v943 = vadd.f32 0.0, %v942
    %v944 = vpop.f32.mrb[0].mxu0
    %v945 = vadd.f32 0.0, %v944
    %v946 = vpop.f32.mrb[0].mxu0
    %v947 = vpop.f32.mrb[0].mxu0
    %948 = vdwg.mxu0
    %949 = vmatprep.subr.bf16.mxu0 %v492
    %950 = vmatpush1.bf16.msra.mxu0 %v491
    %951 = vmatprep.subr.bf16.mxu0 %v496
    %952 = vmatpush1.bf16.msra.mxu0 %v495
    %953 = vmatprep.subr.bf16.mxu0 %v500
    %954 = vmatpush1.bf16.msra.mxu0 %v499
    %955 = vmatprep.subr.bf16.mxu0 %v504
    %956 = vmatpush1.bf16.msra.mxu0 %v503
    %957 = vmatprep.subr.bf16.mxu0 %v508
    %958 = vmatpush1.bf16.msra.mxu0 %v507
    %959 = vmatprep.subr.bf16.mxu0 %v512
    %960 = vmatpush1.bf16.msra.mxu0 %v511
    %961 = vmatprep.subr.bf16.mxu0 %v516
    %962 = vmatpush1.bf16.msra.mxu0 %v515
    %963 = vmatprep.subr.bf16.mxu0 %v520
    %964 = vmatpush1.bf16.msra.mxu0 %v519
    %965 = vmatprep.subr.bf16.mxu0 0
    %966 = vmatpush1.bf16.msra.mxu0 0
    %967 = vmatprep.subr.bf16.mxu0 0
    %968 = vmatpush1.bf16.msra.mxu0 0
    %969 = vmatprep.subr.bf16.mxu0 0
    %970 = vmatpush1.bf16.msra.mxu0 0
    %971 = vmatprep.subr.bf16.mxu0 0
    %972 = vmatpush1.bf16.msra.mxu0 0
    %973 = vmatprep.subr.bf16.mxu0 0
    %974 = vmatpush1.bf16.msra.mxu0 0
    %975 = vmatprep.subr.bf16.mxu0 0
    %976 = vmatpush1.bf16.msra.mxu0 0
    %977 = vmatprep.subr.bf16.mxu0 0
    %978 = vmatpush1.bf16.msra.mxu0 0
    %979 = vmatprep.subr.bf16.mxu0 0
    %980 = vmatpush1.bf16.msra.mxu0 0
    %981 = vmatprep.mubr.bf16.mxu0 0
    %982 = vmatmul.mubr.bf16.gmra.mrb[0].mxu0 %v898
    %v983 = vpop.f32.mrb[0].mxu0
    %v984 = vadd.f32 0.0, %v983
    %v985 = vpop.f32.mrb[0].mxu0
    %v986 = vadd.f32 0.0, %v985
    %v987 = vpop.f32.mrb[0].mxu0
    %v988 = vpop.f32.mrb[0].mxu0
    %989 = vdwg.mxu0
    %v990 = vmul.f32 %v943, %v606
    %v991 = vmul.f32 %v945, %v606
    %v992 = vmul.f32 %v984, %v606
    %v993 = vmul.f32 %v986, %v606
    %v994 = vld [vmem:[#allocation6 + $0x60] sm:$0xff]
    %v995 = vld [vmem:[#allocation6 + $0x68] sm:$0xff]
    %v996 = vld [vmem:[#allocation6 + $0x70] sm:$0xff]
    %v997 = vld [vmem:[#allocation6 + $0x78] sm:$0xff]
    %v998 = vadd.f32 %v990, %v994
    %v999 = vadd.f32 %v991, %v995
    %v1000 = vadd.f32 %v992, %v996
    %v1001 = vadd.f32 %v993, %v997
    %v1002 = vxor.u32 %v998, 2147483648
    %v1003 = vmul.f32 %v1002, 1.442695
    %v1004 = vpow.pop %v1003
    %v1005 = vadd.f32 %v1004, 1.0
    %v1006 = vrcp.pop %v1005
    %v1007 = vmul.f32 1.0, %v1006
    %v1008 = vxor.u32 %v999, 2147483648
    %v1009 = vmul.f32 %v1008, 1.442695
    %v1010 = vpow.pop %v1009
    %v1011 = vadd.f32 %v1010, 1.0
    %v1012 = vrcp.pop %v1011
    %v1013 = vmul.f32 1.0, %v1012
    %v1014 = vtanh.pop %v1000
    %v1015 = vxor.u32 %v1001, 2147483648
    %v1016 = vmul.f32 %v1015, 1.442695
    %v1017 = vpow.pop %v1016
    %v1018 = vadd.f32 %v1017, 1.0
    %v1019 = vrcp.pop %v1018
    %v1020 = vmul.f32 1.0, %v1019
    %v1021 = vmul.f32 %v1013, %v895
    %v1022 = vmul.f32 %v1007, %v1014
    %v1023 = vadd.f32 %v1021, %v1022
    %v1024 = vtanh.pop %v1023
    %v1025 = vmul.f32 %v1020, %v1024
    %v1026 = vpack.c.bf16 %v1025, %v1025
    %s1027 = scalar_lea.vmem [#allocation12], 12
    %1028 = vst [vmem:[%s1027] sm:$0xf] %v1026
    %s1029 = sadd.s32 %s645, 3
    %p1030 = scmp.eq.s32.totalorder %s1029, 7
    // Predicated region
    $region54: #{tpu_custom_call.1} parent=1 // pred_check
      %p1031 = pneg %p1030
    $region55: #{tpu_custom_call.1} parent=1 // pred_check_branch
      %1033 = sbr.rel (%p1031) target = $region57
    $region56: #{tpu_custom_call.1} parent=1 // pred_region
      %1034 = vst [vmem:[#allocation13] sm:$0xff] %v1025
      %1035 = vst [vmem:[#allocation15] sm:$0xff] %v1023
    $region57: #{tpu_custom_call.1} parent=1 // pred_fallthru
      _
    %1036 = vmatprep.subr.bf16.mxu0 %v490
    %1037 = vmatpush1.bf16.msra.mxu0 %v489
    %1038 = vmatprep.subr.bf16.mxu0 %v494
    %1039 = vmatpush1.bf16.msra.mxu0 %v493
    %1040 = vmatprep.subr.bf16.mxu0 %v498
    %1041 = vmatpush1.bf16.msra.mxu0 %v497
    %1042 = vmatprep.subr.bf16.mxu0 %v502
    %1043 = vmatpush1.bf16.msra.mxu0 %v501
    %1044 = vmatprep.subr.bf16.mxu0 %v506
    %1045 = vmatpush1.bf16.msra.mxu0 %v505
    %1046 = vmatprep.subr.bf16.mxu0 %v510
    %1047 = vmatpush1.bf16.msra.mxu0 %v509
    %1048 = vmatprep.subr.bf16.mxu0 %v514
    %1049 = vmatpush1.bf16.msra.mxu0 %v513
    %1050 = vmatprep.subr.bf16.mxu0 %v518
    %1051 = vmatpush1.bf16.msra.mxu0 %v517
    %1052 = vmatprep.subr.bf16.mxu0 0
    %1053 = vmatpush1.bf16.msra.mxu0 0
    %1054 = vmatprep.subr.bf16.mxu0 0
    %1055 = vmatpush1.bf16.msra.mxu0 0
    %1056 = vmatprep.subr.bf16.mxu0 0
    %1057 = vmatpush1.bf16.msra.mxu0 0
    %1058 = vmatprep.subr.bf16.mxu0 0
    %1059 = vmatpush1.bf16.msra.mxu0 0
    %1060 = vmatprep.subr.bf16.mxu0 0
    %1061 = vmatpush1.bf16.msra.mxu0 0
    %1062 = vmatprep.subr.bf16.mxu0 0
    %1063 = vmatpush1.bf16.msra.mxu0 0
    %1064 = vmatprep.subr.bf16.mxu0 0
    %1065 = vmatpush1.bf16.msra.mxu0 0
    %1066 = vmatprep.subr.bf16.mxu0 0
    %1067 = vmatpush1.bf16.msra.mxu0 0
    %1068 = vmatprep.mubr.bf16.mxu0 0
    %1069 = vmatmul.mubr.bf16.gmra.mrb[0].mxu0 %v1026
    %v1070 = vpop.f32.mrb[0].mxu0
    %v1071 = vadd.f32 0.0, %v1070
    %v1072 = vpop.f32.mrb[0].mxu0
    %v1073 = vadd.f32 0.0, %v1072
    %v1074 = vpop.f32.mrb[0].mxu0
    %v1075 = vpop.f32.mrb[0].mxu0
    %1076 = vdwg.mxu0
    %1077 = vmatprep.subr.bf16.mxu0 %v492
    %1078 = vmatpush1.bf16.msra.mxu0 %v491
    %1079 = vmatprep.subr.bf16.mxu0 %v496
    %1080 = vmatpush1.bf16.msra.mxu0 %v495
    %1081 = vmatprep.subr.bf16.mxu0 %v500
    %1082 = vmatpush1.bf16.msra.mxu0 %v499
    %1083 = vmatprep.subr.bf16.mxu0 %v504
    %1084 = vmatpush1.bf16.msra.mxu0 %v503
    %1085 = vmatprep.subr.bf16.mxu0 %v508
    %1086 = vmatpush1.bf16.msra.mxu0 %v507
    %1087 = vmatprep.subr.bf16.mxu0 %v512
    %1088 = vmatpush1.bf16.msra.mxu0 %v511
    %1089 = vmatprep.subr.bf16.mxu0 %v516
    %1090 = vmatpush1.bf16.msra.mxu0 %v515
    %1091 = vmatprep.subr.bf16.mxu0 %v520
    %1092 = vmatpush1.bf16.msra.mxu0 %v519
    %1093 = vmatprep.subr.bf16.mxu0 0
    %1094 = vmatpush1.bf16.msra.mxu0 0
    %1095 = vmatprep.subr.bf16.mxu0 0
    %1096 = vmatpush1.bf16.msra.mxu0 0
    %1097 = vmatprep.subr.bf16.mxu0 0
    %1098 = vmatpush1.bf16.msra.mxu0 0
    %1099 = vmatprep.subr.bf16.mxu0 0
    %1100 = vmatpush1.bf16.msra.mxu0 0
    %1101 = vmatprep.subr.bf16.mxu0 0
    %1102 = vmatpush1.bf16.msra.mxu0 0
    %1103 = vmatprep.subr.bf16.mxu0 0
    %1104 = vmatpush1.bf16.msra.mxu0 0
    %1105 = vmatprep.subr.bf16.mxu0 0
    %1106 = vmatpush1.bf16.msra.mxu0 0
    %1107 = vmatprep.subr.bf16.mxu0 0
    %1108 = vmatpush1.bf16.msra.mxu0 0
    %1109 = vmatprep.mubr.bf16.mxu0 0
    %1110 = vmatmul.mubr.bf16.gmra.mrb[0].mxu0 %v1026
    %v1111 = vpop.f32.mrb[0].mxu0
    %v1112 = vadd.f32 0.0, %v1111
    %v1113 = vpop.f32.mrb[0].mxu0
    %v1114 = vadd.f32 0.0, %v1113
    %v1115 = vpop.f32.mrb[0].mxu0
    %v1116 = vpop.f32.mrb[0].mxu0
    %1117 = vdwg.mxu0
    %v1118 = vmul.f32 %v1071, %v606
    %v1119 = vmul.f32 %v1073, %v606
    %v1120 = vmul.f32 %v1112, %v606
    %v1121 = vmul.f32 %v1114, %v606
    %v1122 = vld [vmem:[#allocation6 + $0x80] sm:$0xff]
    %v1123 = vld [vmem:[#allocation6 + $0x88] sm:$0xff]
    %v1124 = vld [vmem:[#allocation6 + $0x90] sm:$0xff]
    %v1125 = vld [vmem:[#allocation6 + $0x98] sm:$0xff]
    %v1126 = vadd.f32 %v1118, %v1122
    %v1127 = vadd.f32 %v1119, %v1123
    %v1128 = vadd.f32 %v1120, %v1124
    %v1129 = vadd.f32 %v1121, %v1125
    %v1130 = vxor.u32 %v1126, 2147483648
    %v1131 = vmul.f32 %v1130, 1.442695
    %v1132 = vpow.pop %v1131
    %v1133 = vadd.f32 %v1132, 1.0
    %v1134 = vrcp.pop %v1133
    %v1135 = vmul.f32 1.0, %v1134
    %v1136 = vxor.u32 %v1127, 2147483648
    %v1137 = vmul.f32 %v1136, 1.442695
    %v1138 = vpow.pop %v1137
    %v1139 = vadd.f32 %v1138, 1.0
    %v1140 = vrcp.pop %v1139
    %v1141 = vmul.f32 1.0, %v1140
    %v1142 = vtanh.pop %v1128
    %v1143 = vxor.u32 %v1129, 2147483648
    %v1144 = vmul.f32 %v1143, 1.442695
    %v1145 = vpow.pop %v1144
    %v1146 = vadd.f32 %v1145, 1.0
    %v1147 = vrcp.pop %v1146
    %v1148 = vmul.f32 1.0, %v1147
    %v1149 = vmul.f32 %v1141, %v1023
    %v1150 = vmul.f32 %v1135, %v1142
    %v1151 = vadd.f32 %v1149, %v1150
    %v1152 = vtanh.pop %v1151
    %v1153 = vmul.f32 %v1148, %v1152
    %v1154 = vpack.c.bf16 %v1153, %v1153
    %s1155 = scalar_lea.vmem [#allocation12], 16
    %1156 = vst [vmem:[%s1155] sm:$0xf] %v1154
    %s1157 = sadd.s32 %s645, 4
    %p1158 = scmp.eq.s32.totalorder %s1157, 7
    // Predicated region
    $region58: #{tpu_custom_call.1} parent=1 // pred_check
      %p1159 = pneg %p1158
    $region59: #{tpu_custom_call.1} parent=1 // pred_check_branch
      %1161 = sbr.rel (%p1159) target = $region61
    $region60: #{tpu_custom_call.1} parent=1 // pred_region
      %1162 = vst [vmem:[#allocation13] sm:$0xff] %v1153
      %1163 = vst [vmem:[#allocation15] sm:$0xff] %v1151
    $region61: #{tpu_custom_call.1} parent=1 // pred_fallthru
      _
    %1164 = vmatprep.subr.bf16.mxu0 %v490
    %1165 = vmatpush1.bf16.msra.mxu0 %v489
    %1166 = vmatprep.subr.bf16.mxu0 %v494
    %1167 = vmatpush1.bf16.msra.mxu0 %v493
    %1168 = vmatprep.subr.bf16.mxu0 %v498
    %1169 = vmatpush1.bf16.msra.mxu0 %v497
    %1170 = vmatprep.subr.bf16.mxu0 %v502
    %1171 = vmatpush1.bf16.msra.mxu0 %v501
    %1172 = vmatprep.subr.bf16.mxu0 %v506
    %1173 = vmatpush1.bf16.msra.mxu0 %v505
    %1174 = vmatprep.subr.bf16.mxu0 %v510
    %1175 = vmatpush1.bf16.msra.mxu0 %v509
    %1176 = vmatprep.subr.bf16.mxu0 %v514
    %1177 = vmatpush1.bf16.msra.mxu0 %v513
    %1178 = vmatprep.subr.bf16.mxu0 %v518
    %1179 = vmatpush1.bf16.msra.mxu0 %v517
    %1180 = vmatprep.subr.bf16.mxu0 0
    %1181 = vmatpush1.bf16.msra.mxu0 0
    %1182 = vmatprep.subr.bf16.mxu0 0
    %1183 = vmatpush1.bf16.msra.mxu0 0
    %1184 = vmatprep.subr.bf16.mxu0 0
    %1185 = vmatpush1.bf16.msra.mxu0 0
    %1186 = vmatprep.subr.bf16.mxu0 0
    %1187 = vmatpush1.bf16.msra.mxu0 0
    %1188 = vmatprep.subr.bf16.mxu0 0
    %1189 = vmatpush1.bf16.msra.mxu0 0
    %1190 = vmatprep.subr.bf16.mxu0 0
    %1191 = vmatpush1.bf16.msra.mxu0 0
    %1192 = vmatprep.subr.bf16.mxu0 0
    %1193 = vmatpush1.bf16.msra.mxu0 0
    %1194 = vmatprep.subr.bf16.mxu0 0
    %1195 = vmatpush1.bf16.msra.mxu0 0
    %1196 = vmatprep.mubr.bf16.mxu0 0
    %1197 = vmatmul.mubr.bf16.gmra.mrb[0].mxu0 %v1154
    %v1198 = vpop.f32.mrb[0].mxu0
    %v1199 = vadd.f32 0.0, %v1198
    %v1200 = vpop.f32.mrb[0].mxu0
    %v1201 = vadd.f32 0.0, %v1200
    %v1202 = vpop.f32.mrb[0].mxu0
    %v1203 = vpop.f32.mrb[0].mxu0
    %1204 = vdwg.mxu0
    %1205 = vmatprep.subr.bf16.mxu0 %v492
    %1206 = vmatpush1.bf16.msra.mxu0 %v491
    %1207 = vmatprep.subr.bf16.mxu0 %v496
    %1208 = vmatpush1.bf16.msra.mxu0 %v495
    %1209 = vmatprep.subr.bf16.mxu0 %v500
    %1210 = vmatpush1.bf16.msra.mxu0 %v499
    %1211 = vmatprep.subr.bf16.mxu0 %v504
    %1212 = vmatpush1.bf16.msra.mxu0 %v503
    %1213 = vmatprep.subr.bf16.mxu0 %v508
    %1214 = vmatpush1.bf16.msra.mxu0 %v507
    %1215 = vmatprep.subr.bf16.mxu0 %v512
    %1216 = vmatpush1.bf16.msra.mxu0 %v511
    %1217 = vmatprep.subr.bf16.mxu0 %v516
    %1218 = vmatpush1.bf16.msra.mxu0 %v515
    %1219 = vmatprep.subr.bf16.mxu0 %v520
    %1220 = vmatpush1.bf16.msra.mxu0 %v519
    %1221 = vmatprep.subr.bf16.mxu0 0
    %1222 = vmatpush1.bf16.msra.mxu0 0
    %1223 = vmatprep.subr.bf16.mxu0 0
    %1224 = vmatpush1.bf16.msra.mxu0 0
    %1225 = vmatprep.subr.bf16.mxu0 0
    %1226 = vmatpush1.bf16.msra.mxu0 0
    %1227 = vmatprep.subr.bf16.mxu0 0
    %1228 = vmatpush1.bf16.msra.mxu0 0
    %1229 = vmatprep.subr.bf16.mxu0 0
    %1230 = vmatpush1.bf16.msra.mxu0 0
    %1231 = vmatprep.subr.bf16.mxu0 0
    %1232 = vmatpush1.bf16.msra.mxu0 0
    %1233 = vmatprep.subr.bf16.mxu0 0
    %1234 = vmatpush1.bf16.msra.mxu0 0
    %1235 = vmatprep.subr.bf16.mxu0 0
    %1236 = vmatpush1.bf16.msra.mxu0 0
    %1237 = vmatprep.mubr.bf16.mxu0 0
    %1238 = vmatmul.mubr.bf16.gmra.mrb[0].mxu0 %v1154
    %v1239 = vpop.f32.mrb[0].mxu0
    %v1240 = vadd.f32 0.0, %v1239
    %v1241 = vpop.f32.mrb[0].mxu0
    %v1242 = vadd.f32 0.0, %v1241
    %v1243 = vpop.f32.mrb[0].mxu0
    %v1244 = vpop.f32.mrb[0].mxu0
    %1245 = vdwg.mxu0
    %v1246 = vmul.f32 %v1199, %v606
    %v1247 = vmul.f32 %v1201, %v606
    %v1248 = vmul.f32 %v1240, %v606
    %v1249 = vmul.f32 %v1242, %v606
    %v1250 = vld [vmem:[#allocation6 + $0xa0] sm:$0xff]
    %v1251 = vld [vmem:[#allocation6 + $0xa8] sm:$0xff]
    %v1252 = vld [vmem:[#allocation6 + $0xb0] sm:$0xff]
    %v1253 = vld [vmem:[#allocation6 + $0xb8] sm:$0xff]
    %v1254 = vadd.f32 %v1246, %v1250
    %v1255 = vadd.f32 %v1247, %v1251
    %v1256 = vadd.f32 %v1248, %v1252
    %v1257 = vadd.f32 %v1249, %v1253
    %v1258 = vxor.u32 %v1254, 2147483648
    %v1259 = vmul.f32 %v1258, 1.442695
    %v1260 = vpow.pop %v1259
    %v1261 = vadd.f32 %v1260, 1.0
    %v1262 = vrcp.pop %v1261
    %v1263 = vmul.f32 1.0, %v1262
    %v1264 = vxor.u32 %v1255, 2147483648
    %v1265 = vmul.f32 %v1264, 1.442695
    %v1266 = vpow.pop %v1265
    %v1267 = vadd.f32 %v1266, 1.0
    %v1268 = vrcp.pop %v1267
    %v1269 = vmul.f32 1.0, %v1268
    %v1270 = vtanh.pop %v1256
    %v1271 = vxor.u32 %v1257, 2147483648
    %v1272 = vmul.f32 %v1271, 1.442695
    %v1273 = vpow.pop %v1272
    %v1274 = vadd.f32 %v1273, 1.0
    %v1275 = vrcp.pop %v1274
    %v1276 = vmul.f32 1.0, %v1275
    %v1277 = vmul.f32 %v1269, %v1151
    %v1278 = vmul.f32 %v1263, %v1270
    %v1279 = vadd.f32 %v1277, %v1278
    %v1280 = vtanh.pop %v1279
    %v1281 = vmul.f32 %v1276, %v1280
    %v1282 = vpack.c.bf16 %v1281, %v1281
    %s1283 = scalar_lea.vmem [#allocation12], 20
    %1284 = vst [vmem:[%s1283] sm:$0xf] %v1282
    %s1285 = sadd.s32 %s645, 5
    %p1286 = scmp.eq.s32.totalorder %s1285, 7
    // Predicated region
    $region62: #{tpu_custom_call.1} parent=1 // pred_check
      %p1287 = pneg %p1286
    $region63: #{tpu_custom_call.1} parent=1 // pred_check_branch
      %1289 = sbr.rel (%p1287) target = $region65
    $region64: #{tpu_custom_call.1} parent=1 // pred_region
      %1290 = vst [vmem:[#allocation13] sm:$0xff] %v1281
      %1291 = vst [vmem:[#allocation15] sm:$0xff] %v1279
    $region65: #{tpu_custom_call.1} parent=1 // pred_fallthru
      _
    %1292 = vmatprep.subr.bf16.mxu0 %v490
    %1293 = vmatpush1.bf16.msra.mxu0 %v489
    %1294 = vmatprep.subr.bf16.mxu0 %v494
    %1295 = vmatpush1.bf16.msra.mxu0 %v493
    %1296 = vmatprep.subr.bf16.mxu0 %v498
    %1297 = vmatpush1.bf16.msra.mxu0 %v497
    %1298 = vmatprep.subr.bf16.mxu0 %v502
    %1299 = vmatpush1.bf16.msra.mxu0 %v501
    %1300 = vmatprep.subr.bf16.mxu0 %v506
    %1301 = vmatpush1.bf16.msra.mxu0 %v505
    %1302 = vmatprep.subr.bf16.mxu0 %v510
    %1303 = vmatpush1.bf16.msra.mxu0 %v509
    %1304 = vmatprep.subr.bf16.mxu0 %v514
    %1305 = vmatpush1.bf16.msra.mxu0 %v513
    %1306 = vmatprep.subr.bf16.mxu0 %v518
    %1307 = vmatpush1.bf16.msra.mxu0 %v517
    %1308 = vmatprep.subr.bf16.mxu0 0
    %1309 = vmatpush1.bf16.msra.mxu0 0
    %1310 = vmatprep.subr.bf16.mxu0 0
    %1311 = vmatpush1.bf16.msra.mxu0 0
    %1312 = vmatprep.subr.bf16.mxu0 0
    %1313 = vmatpush1.bf16.msra.mxu0 0
    %1314 = vmatprep.subr.bf16.mxu0 0
    %1315 = vmatpush1.bf16.msra.mxu0 0
    %1316 = vmatprep.subr.bf16.mxu0 0
    %1317 = vmatpush1.bf16.msra.mxu0 0
    %1318 = vmatprep.subr.bf16.mxu0 0
    %1319 = vmatpush1.bf16.msra.mxu0 0
    %1320 = vmatprep.subr.bf16.mxu0 0
    %1321 = vmatpush1.bf16.msra.mxu0 0
    %1322 = vmatprep.subr.bf16.mxu0 0
    %1323 = vmatpush1.bf16.msra.mxu0 0
    %1324 = vmatprep.mubr.bf16.mxu0 0
    %1325 = vmatmul.mubr.bf16.gmra.mrb[0].mxu0 %v1282
    %v1326 = vpop.f32.mrb[0].mxu0
    %v1327 = vadd.f32 0.0, %v1326
    %v1328 = vpop.f32.mrb[0].mxu0
    %v1329 = vadd.f32 0.0, %v1328
    %v1330 = vpop.f32.mrb[0].mxu0
    %v1331 = vpop.f32.mrb[0].mxu0
    %1332 = vdwg.mxu0
    %1333 = vmatprep.subr.bf16.mxu0 %v492
    %1334 = vmatpush1.bf16.msra.mxu0 %v491
    %1335 = vmatprep.subr.bf16.mxu0 %v496
    %1336 = vmatpush1.bf16.msra.mxu0 %v495
    %1337 = vmatprep.subr.bf16.mxu0 %v500
    %1338 = vmatpush1.bf16.msra.mxu0 %v499
    %1339 = vmatprep.subr.bf16.mxu0 %v504
    %1340 = vmatpush1.bf16.msra.mxu0 %v503
    %1341 = vmatprep.subr.bf16.mxu0 %v508
    %1342 = vmatpush1.bf16.msra.mxu0 %v507
    %1343 = vmatprep.subr.bf16.mxu0 %v512
    %1344 = vmatpush1.bf16.msra.mxu0 %v511
    %1345 = vmatprep.subr.bf16.mxu0 %v516
    %1346 = vmatpush1.bf16.msra.mxu0 %v515
    %1347 = vmatprep.subr.bf16.mxu0 %v520
    %1348 = vmatpush1.bf16.msra.mxu0 %v519
    %1349 = vmatprep.subr.bf16.mxu0 0
    %1350 = vmatpush1.bf16.msra.mxu0 0
    %1351 = vmatprep.subr.bf16.mxu0 0
    %1352 = vmatpush1.bf16.msra.mxu0 0
    %1353 = vmatprep.subr.bf16.mxu0 0
    %1354 = vmatpush1.bf16.msra.mxu0 0
    %1355 = vmatprep.subr.bf16.mxu0 0
    %1356 = vmatpush1.bf16.msra.mxu0 0
    %1357 = vmatprep.subr.bf16.mxu0 0
    %1358 = vmatpush1.bf16.msra.mxu0 0
    %1359 = vmatprep.subr.bf16.mxu0 0
    %1360 = vmatpush1.bf16.msra.mxu0 0
    %1361 = vmatprep.subr.bf16.mxu0 0
    %1362 = vmatpush1.bf16.msra.mxu0 0
    %1363 = vmatprep.subr.bf16.mxu0 0
    %1364 = vmatpush1.bf16.msra.mxu0 0
    %1365 = vmatprep.mubr.bf16.mxu0 0
    %1366 = vmatmul.mubr.bf16.gmra.mrb[0].mxu0 %v1282
    %v1367 = vpop.f32.mrb[0].mxu0
    %v1368 = vadd.f32 0.0, %v1367
    %v1369 = vpop.f32.mrb[0].mxu0
    %v1370 = vadd.f32 0.0, %v1369
    %v1371 = vpop.f32.mrb[0].mxu0
    %v1372 = vpop.f32.mrb[0].mxu0
    %1373 = vdwg.mxu0
    %v1374 = vmul.f32 %v1327, %v606
    %v1375 = vmul.f32 %v1329, %v606
    %v1376 = vmul.f32 %v1368, %v606
    %v1377 = vmul.f32 %v1370, %v606
    %v1378 = vld [vmem:[#allocation6 + $0xc0] sm:$0xff]
    %v1379 = vld [vmem:[#allocation6 + $0xc8] sm:$0xff]
    %v1380 = vld [vmem:[#allocation6 + $0xd0] sm:$0xff]
    %v1381 = vld [vmem:[#allocation6 + $0xd8] sm:$0xff]
    %v1382 = vadd.f32 %v1374, %v1378
    %v1383 = vadd.f32 %v1375, %v1379
    %v1384 = vadd.f32 %v1376, %v1380
    %v1385 = vadd.f32 %v1377, %v1381
    %v1386 = vxor.u32 %v1382, 2147483648
    %v1387 = vmul.f32 %v1386, 1.442695
    %v1388 = vpow.pop %v1387
    %v1389 = vadd.f32 %v1388, 1.0
    %v1390 = vrcp.pop %v1389
    %v1391 = vmul.f32 1.0, %v1390
    %v1392 = vxor.u32 %v1383, 2147483648
    %v1393 = vmul.f32 %v1392, 1.442695
    %v1394 = vpow.pop %v1393
    %v1395 = vadd.f32 %v1394, 1.0
    %v1396 = vrcp.pop %v1395
    %v1397 = vmul.f32 1.0, %v1396
    %v1398 = vtanh.pop %v1384
    %v1399 = vxor.u32 %v1385, 2147483648
    %v1400 = vmul.f32 %v1399, 1.442695
    %v1401 = vpow.pop %v1400
    %v1402 = vadd.f32 %v1401, 1.0
    %v1403 = vrcp.pop %v1402
    %v1404 = vmul.f32 1.0, %v1403
    %v1405 = vmul.f32 %v1397, %v1279
    %v1406 = vmul.f32 %v1391, %v1398
    %v1407 = vadd.f32 %v1405, %v1406
    %v1408 = vtanh.pop %v1407
    %v1409 = vmul.f32 %v1404, %v1408
    %v1410 = vpack.c.bf16 %v1409, %v1409
    %s1411 = scalar_lea.vmem [#allocation12], 24
    %1412 = vst [vmem:[%s1411] sm:$0xf] %v1410
    %s1413 = sadd.s32 %s645, 6
    %p1414 = scmp.eq.s32.totalorder %s1413, 7
    // Predicated region
    $region66: #{tpu_custom_call.1} parent=1 // pred_check
      %p1415 = pneg %p1414
    $region67: #{tpu_custom_call.1} parent=1 // pred_check_branch
      %1417 = sbr.rel (%p1415) target = $region69
    $region68: #{tpu_custom_call.1} parent=1 // pred_region
      %1418 = vst [vmem:[#allocation13] sm:$0xff] %v1409
      %1419 = vst [vmem:[#allocation15] sm:$0xff] %v1407
    $region69: #{tpu_custom_call.1} parent=1 // pred_fallthru
      _
    %1420 = vmatprep.subr.bf16.mxu0 %v490
    %1421 = vmatpush1.bf16.msra.mxu0 %v489
    %1422 = vmatprep.subr.bf16.mxu0 %v494
    %1423 = vmatpush1.bf16.msra.mxu0 %v493
    %1424 = vmatprep.subr.bf16.mxu0 %v498
    %1425 = vmatpush1.bf16.msra.mxu0 %v497
    %1426 = vmatprep.subr.bf16.mxu0 %v502
    %1427 = vmatpush1.bf16.msra.mxu0 %v501
    %1428 = vmatprep.subr.bf16.mxu0 %v506
    %1429 = vmatpush1.bf16.msra.mxu0 %v505
    %1430 = vmatprep.subr.bf16.mxu0 %v510
    %1431 = vmatpush1.bf16.msra.mxu0 %v509
    %1432 = vmatprep.subr.bf16.mxu0 %v514
    %1433 = vmatpush1.bf16.msra.mxu0 %v513
    %1434 = vmatprep.subr.bf16.mxu0 %v518
    %1435 = vmatpush1.bf16.msra.mxu0 %v517
    %1436 = vmatprep.subr.bf16.mxu0 0
    %1437 = vmatpush1.bf16.msra.mxu0 0
    %1438 = vmatprep.subr.bf16.mxu0 0
    %1439 = vmatpush1.bf16.msra.mxu0 0
    %1440 = vmatprep.subr.bf16.mxu0 0
    %1441 = vmatpush1.bf16.msra.mxu0 0
    %1442 = vmatprep.subr.bf16.mxu0 0
    %1443 = vmatpush1.bf16.msra.mxu0 0
    %1444 = vmatprep.subr.bf16.mxu0 0
    %1445 = vmatpush1.bf16.msra.mxu0 0
    %1446 = vmatprep.subr.bf16.mxu0 0
    %1447 = vmatpush1.bf16.msra.mxu0 0
    %1448 = vmatprep.subr.bf16.mxu0 0
    %1449 = vmatpush1.bf16.msra.mxu0 0
    %1450 = vmatprep.subr.bf16.mxu0 0
    %1451 = vmatpush1.bf16.msra.mxu0 0
    %1452 = vmatprep.mubr.bf16.mxu0 0
    %1453 = vmatmul.mubr.bf16.gmra.mrb[0].mxu0 %v1410
    %v1454 = vpop.f32.mrb[0].mxu0
    %v1455 = vadd.f32 0.0, %v1454
    %v1456 = vpop.f32.mrb[0].mxu0
    %v1457 = vadd.f32 0.0, %v1456
    %v1458 = vpop.f32.mrb[0].mxu0
    %v1459 = vpop.f32.mrb[0].mxu0
    %1460 = vdwg.mxu0
    %1461 = vmatprep.subr.bf16.mxu0 %v492
    %1462 = vmatpush1.bf16.msra.mxu0 %v491
    %1463 = vmatprep.subr.bf16.mxu0 %v496
    %1464 = vmatpush1.bf16.msra.mxu0 %v495
    %1465 = vmatprep.subr.bf16.mxu0 %v500
    %1466 = vmatpush1.bf16.msra.mxu0 %v499
    %1467 = vmatprep.subr.bf16.mxu0 %v504
    %1468 = vmatpush1.bf16.msra.mxu0 %v503
    %1469 = vmatprep.subr.bf16.mxu0 %v508
    %1470 = vmatpush1.bf16.msra.mxu0 %v507
    %1471 = vmatprep.subr.bf16.mxu0 %v512
    %1472 = vmatpush1.bf16.msra.mxu0 %v511
    %1473 = vmatprep.subr.bf16.mxu0 %v516
    %1474 = vmatpush1.bf16.msra.mxu0 %v515
    %1475 = vmatprep.subr.bf16.mxu0 %v520
    %1476 = vmatpush1.bf16.msra.mxu0 %v519
    %1477 = vmatprep.subr.bf16.mxu0 0
    %1478 = vmatpush1.bf16.msra.mxu0 0
    %1479 = vmatprep.subr.bf16.mxu0 0
    %1480 = vmatpush1.bf16.msra.mxu0 0
    %1481 = vmatprep.subr.bf16.mxu0 0
    %1482 = vmatpush1.bf16.msra.mxu0 0
    %1483 = vmatprep.subr.bf16.mxu0 0
    %1484 = vmatpush1.bf16.msra.mxu0 0
    %1485 = vmatprep.subr.bf16.mxu0 0
    %1486 = vmatpush1.bf16.msra.mxu0 0
    %1487 = vmatprep.subr.bf16.mxu0 0
    %1488 = vmatpush1.bf16.msra.mxu0 0
    %1489 = vmatprep.subr.bf16.mxu0 0
    %1490 = vmatpush1.bf16.msra.mxu0 0
    %1491 = vmatprep.subr.bf16.mxu0 0
    %1492 = vmatpush1.bf16.msra.mxu0 0
    %1493 = vmatprep.mubr.bf16.mxu0 0
    %1494 = vmatmul.mubr.bf16.gmra.mrb[0].mxu0 %v1410
    %v1495 = vpop.f32.mrb[0].mxu0
    %v1496 = vadd.f32 0.0, %v1495
    %v1497 = vpop.f32.mrb[0].mxu0
    %v1498 = vadd.f32 0.0, %v1497
    %v1499 = vpop.f32.mrb[0].mxu0
    %v1500 = vpop.f32.mrb[0].mxu0
    %1501 = vdwg.mxu0
    %v1502 = vmul.f32 %v1455, %v606
    %v1503 = vmul.f32 %v1457, %v606
    %v1504 = vmul.f32 %v1496, %v606
    %v1505 = vmul.f32 %v1498, %v606
    %v1506 = vld [vmem:[#allocation6 + $0xe0] sm:$0xff]
    %v1507 = vld [vmem:[#allocation6 + $0xe8] sm:$0xff]
    %v1508 = vld [vmem:[#allocation6 + $0xf0] sm:$0xff]
    %v1509 = vld [vmem:[#allocation6 + $0xf8] sm:$0xff]
    %v1510 = vadd.f32 %v1502, %v1506
    %v1511 = vadd.f32 %v1503, %v1507
    %v1512 = vadd.f32 %v1504, %v1508
    %v1513 = vadd.f32 %v1505, %v1509
    %v1514 = vxor.u32 %v1510, 2147483648
    %v1515 = vmul.f32 %v1514, 1.442695
    %v1516 = vpow.pop %v1515
    %v1517 = vadd.f32 %v1516, 1.0
    %v1518 = vrcp.pop %v1517
    %v1519 = vmul.f32 1.0, %v1518
    %v1520 = vxor.u32 %v1511, 2147483648
    %v1521 = vmul.f32 %v1520, 1.442695
    %v1522 = vpow.pop %v1521
    %v1523 = vadd.f32 %v1522, 1.0
    %v1524 = vrcp.pop %v1523
    %v1525 = vmul.f32 1.0, %v1524
    %v1526 = vtanh.pop %v1512
    %v1527 = vxor.u32 %v1513, 2147483648
    %v1528 = vmul.f32 %v1527, 1.442695
    %v1529 = vpow.pop %v1528
    %v1530 = vadd.f32 %v1529, 1.0
    %v1531 = vrcp.pop %v1530
    %v1532 = vmul.f32 1.0, %v1531
    %v1533 = vmul.f32 %v1525, %v1407
    %v1534 = vmul.f32 %v1519, %v1526
    %v1535 = vadd.f32 %v1533, %v1534
    %v1536 = vtanh.pop %v1535
    %v1537 = vmul.f32 %v1532, %v1536
    %v1538 = vpack.c.bf16 %v1537, %v1537
    %s1539 = scalar_lea.vmem [#allocation12], 28
    %1540 = vst [vmem:[%s1539] sm:$0xf] %v1538
    %s1541 = sadd.s32 %s645, 7
    %p1542 = scmp.eq.s32.totalorder %s1541, 7
    // Predicated region
    $region70: #{tpu_custom_call.1} parent=1 // pred_check
      %p1543 = pneg %p1542
    $region71: #{tpu_custom_call.1} parent=1 // pred_check_branch
      %1545 = sbr.rel (%p1543) target = $region73
    $region72: #{tpu_custom_call.1} parent=1 // pred_region
      %1546 = vst [vmem:[#allocation13] sm:$0xff] %v1537
      %1547 = vst [vmem:[#allocation15] sm:$0xff] %v1535
    $region73: #{tpu_custom_call.1} parent=1 // pred_fallthru
      _
    %1548 = vst [vmem:[#allocation2] sm:$0xff] %v1537
    %1549 = vst [vmem:[#allocation3] sm:$0xff] %v1535
    // Predicated region
    $region74: #{tpu_custom_call.1} parent=1 // pred_check
      _
    $region75: #{tpu_custom_call.1} parent=1 // pred_check_branch
      %1551 = sbr.rel (0) target = $region77
    $region76: #{tpu_custom_call.1} parent=1 // pred_region
      %s1553 = ssub.s32 512, 512
      %1554 = vsyncadd [#allocation9], %s1553
      %s1555 = sshll.u32 [#allocation12], 4
      %s1556 = int_to_ptr.vmem [resolvable:$true] %s1555
      %1561 = dma.vmem_to_hbm [thread:$0]  %s1556, 512, %s7, [#allocation9], 64, 64, 4
    $region77: #{tpu_custom_call.1} parent=1 // pred_fallthru
      _
    // Predicated region
    $region78: #{tpu_custom_call.1} parent=1 // pred_check
      _
    $region79: #{tpu_custom_call.1} parent=1 // pred_check_branch
      %1563 = sbr.rel (0) target = $region81
    $region80: #{tpu_custom_call.1} parent=1 // pred_region
      %s1565 = ssub.s32 128, 128
      %1566 = vsyncadd [#allocation14], %s1565
      %s1568 = sshll.u32 [#allocation13], 4
      %s1569 = int_to_ptr.vmem [resolvable:$true] %s1568
      %1571 = dma.vmem_to_hbm [thread:$0]  %s1569, 128, %s8, [#allocation14]
    $region81: #{tpu_custom_call.1} parent=1 // pred_fallthru
      _
    // Predicated region
    $region82: #{tpu_custom_call.1} parent=1 // pred_check
      _
    $region83: #{tpu_custom_call.1} parent=1 // pred_check_branch
      %1573 = sbr.rel (0) target = $region85
    $region84: #{tpu_custom_call.1} parent=1 // pred_region
      %s1575 = ssub.s32 128, 128
      %1576 = vsyncadd [#allocation14], %s1575
      %s1578 = sshll.u32 [#allocation15], 4
      %s1579 = int_to_ptr.vmem [resolvable:$true] %s1578
      %1581 = dma.vmem_to_hbm [thread:$0]  %s1579, 128, %s9, [#allocation14]
    $region85: #{tpu_custom_call.1} parent=1 // pred_fallthru
      _
    // Predicated region
    $region86: #{tpu_custom_call.1} parent=1 // pred_check
      _
    $region87: #{tpu_custom_call.1} parent=1 // pred_check_branch
      %1583 = sbr.rel (0) target = $region89
    $region88: #{tpu_custom_call.1} parent=1 // pred_region
      %1584 = dma.done [#allocation9], 512
    $region89: #{tpu_custom_call.1} parent=1 // pred_fallthru
      _
    // Predicated region
    $region90: #{tpu_custom_call.1} parent=1 // pred_check
      _
    $region91: #{tpu_custom_call.1} parent=1 // pred_check_branch
      %1586 = sbr.rel (0) target = $region93
    $region92: #{tpu_custom_call.1} parent=1 // pred_region
      %1587 = dma.done [#allocation14], 128
    $region93: #{tpu_custom_call.1} parent=1 // pred_fallthru
      _
    // Predicated region
    $region94: #{tpu_custom_call.1} parent=1 // pred_check
      _
    $region95: #{tpu_custom_call.1} parent=1 // pred_check_branch
      %1589 = sbr.rel (0) target = $region97
    $region96: #{tpu_custom_call.1} parent=1 // pred_region
      %1590 = dma.done [#allocation14], 128
    $region97: #{tpu_custom_call.1} parent=1 // pred_fallthru
      _
    %1591 = vsyncpa [#allocation8], 1
    %1592 = vsyncpa [#allocation9], 1
    %1593 = vsyncpa [#allocation14], 1
    %1594 = vsyncpa [#allocation10], 1

</llo_original>
